<compile_context>
chip_gen: v7x
topology: tpu7x:2x2x1
jax: 0.10.0
libtpu: 0.0.40
codegen_flags: <defaults>
</compile_context>

<pallas_src>
import functools

import jax
import jax.numpy as jnp
from jax.experimental import pallas as pl
from jax.experimental.pallas import tpu as pltpu

LANE = 128     # lane width: padded feature dims are multiples of this
SUBLANE = 8    # f32 sublane width: batch tiles are multiples of this


def _round_up(n, m):
    return ((n + m - 1) // m) * m


# ---------------------------------------------------------------------------
# Pallas kernel: 3-layer MLP.
# x_ref: (B_TILE, IN_DIM) f32 (natural feature width, cast to bf16 in-kernel);
# weights bf16 (lane-padded on hidden/output dims); biases f32 (1, F_PAD).
# ---------------------------------------------------------------------------
def _mlp_kernel(x_ref, w1_ref, b1_ref, w2_ref, b2_ref, w3_ref, b3_ref, o_ref):
    # Layer 1: bf16 MXU matmul with f32 accumulation; bias + ReLU in f32 (VPU).
    x = x_ref[...].astype(w1_ref.dtype)
    h1 = jnp.dot(x, w1_ref[...], preferred_element_type=jnp.float32)
    h1 = jnp.maximum(h1 + b1_ref[...], 0.0)
    # Layer 2
    h2 = jnp.dot(h1.astype(w2_ref.dtype), w2_ref[...],
                 preferred_element_type=jnp.float32)
    h2 = jnp.maximum(h2 + b2_ref[...], 0.0)
    # Layer 3 (k*k logits live in the first lanes; the rest is zero padding)
    out = jnp.dot(h2.astype(w3_ref.dtype), w3_ref[...],
                  preferred_element_type=jnp.float32)
    o_ref[...] = (out + b3_ref[...]).astype(o_ref.dtype)


def mlp_pallas(x, padded_params, *, b_tile=None):
    """Run the MLP. x: (B, input_dim) f32; params lane-padded via pad_params.

    Returns padded logits (B, OUT_PAD) f32; caller slices [:, :k*k].
    """
    w1, b1, w2, b2, w3, b3 = padded_params
    B, in_dim = x.shape
    hid_pad = w1.shape[1]
    out_pad = w3.shape[1]

    if b_tile is None:
        b_tile = min(1024, _round_up(max(B, 1), SUBLANE))
    b_tile = _round_up(b_tile, SUBLANE)
    b_padded = _round_up(max(B, 1), b_tile)
    n_tiles = b_padded // b_tile

    # Only the batch dim needs padding (features keep their natural width).
    x_pad = x if b_padded == B else jnp.pad(x, ((0, b_padded - B), (0, 0)))

    per_tile = lambda i: (i, 0)     # x / out tiles walk the batch
    resident = lambda i: (0, 0)     # weights & biases stay VMEM-resident

    flops = 2 * b_padded * (in_dim * hid_pad + hid_pad * hid_pad
                            + hid_pad * out_pad)
    bytes_accessed = (x_pad.size * 4                      # f32 activations in
                      + b_padded * out_pad * 4            # f32 logits out
                      + (w1.size + w2.size + w3.size) * 2
                      + (b1.size + b2.size + b3.size) * 4)

    out = pl.pallas_call(
        _mlp_kernel,
        out_shape=jax.ShapeDtypeStruct((b_padded, out_pad), jnp.float32),
        grid_spec=pltpu.PrefetchScalarGridSpec(
            num_scalar_prefetch=0,
            grid=(n_tiles,),
            in_specs=[
                pl.BlockSpec((b_tile, in_dim), per_tile),   # x (pipelined)
                pl.BlockSpec(w1.shape, resident),
                pl.BlockSpec(b1.shape, resident),
                pl.BlockSpec(w2.shape, resident),
                pl.BlockSpec(b2.shape, resident),
                pl.BlockSpec(w3.shape, resident),
                pl.BlockSpec(b3.shape, resident),
            ],
            out_specs=pl.BlockSpec((b_tile, out_pad), per_tile),
        ),
        compiler_params=pltpu.CompilerParams(
            dimension_semantics=("parallel",),   # megacore-shardable on v7x
        ),
        cost_estimate=pl.CostEstimate(
            flops=flops, transcendentals=0, bytes_accessed=bytes_accessed),
    )(x_pad, w1, b1, w2, b2, w3, b3)
    return out[:B]


# ---------------------------------------------------------------------------
# Parameter handling.
# ---------------------------------------------------------------------------
def init_params(key, input_dim, k, hidden_dim=100):
    """PyTorch nn.Linear-style init (U[-1/sqrt(fan_in), +]) at logical shapes.

    Weights are stored (in_features, out_features) so the kernel computes
    x @ W + b, identical to PyTorch's x @ W.T with W of shape (out, in).
    """
    ks = jax.random.split(key, 6)

    def linear(kw, kb, fan_in, fan_out):
        bound = 1.0 / jnp.sqrt(jnp.float32(fan_in))
        w = jax.random.uniform(kw, (fan_in, fan_out), jnp.float32, -bound, bound)
        b = jax.random.uniform(kb, (1, fan_out), jnp.float32, -bound, bound)
        return w, b

    w1, b1 = linear(ks[0], ks[1], input_dim, hidden_dim)
    w2, b2 = linear(ks[2], ks[3], hidden_dim, hidden_dim)
    w3, b3 = linear(ks[4], ks[5], hidden_dim, k * k)
    return (w1, b1, w2, b2, w3, b3)


def pad_params(params):
    """Zero-pad hidden/output feature dims to 128 lanes; weights -> bf16.

    The input dim of w1 stays at its natural width (the kernel takes x
    unpadded).  Zero padding is exact: padded hidden units get zero weight
    and zero bias, so ReLU gives 0 and the padded rows of the next weight
    are also zero.
    """
    w1, b1, w2, b2, w3, b3 = params
    in_dim, hidden = w1.shape
    kk = w3.shape[1]
    hid_pad = _round_up(hidden, LANE)
    out_pad = _round_up(kk, LANE)

    w1p = jnp.pad(w1, ((0, 0), (0, hid_pad - hidden))).astype(jnp.bfloat16)
    b1p = jnp.pad(b1, ((0, 0), (0, hid_pad - hidden)))                    # f32
    w2p = jnp.pad(w2, ((0, hid_pad - hidden), (0, hid_pad - hidden))).astype(jnp.bfloat16)
    b2p = jnp.pad(b2, ((0, 0), (0, hid_pad - hidden)))
    w3p = jnp.pad(w3, ((0, hid_pad - hidden), (0, out_pad - kk))).astype(jnp.bfloat16)
    b3p = jnp.pad(b3, ((0, 0), (0, out_pad - kk)))
    return (w1p, b1p, w2p, b2p, w3p, b3p)


def mlp_ref(x, params):
    """Pure-JAX f32 reference of the MLP (for correctness checks)."""
    w1, b1, w2, b2, w3, b3 = params
    h1 = jnp.maximum(x @ w1 + b1, 0.0)
    h2 = jnp.maximum(h1 @ w2 + b2, 0.0)
    return h2 @ w3 + b3


# ---------------------------------------------------------------------------
# Full forward pass of RotationMatrixNet.
# ---------------------------------------------------------------------------
@functools.partial(jax.jit, static_argnums=(2,), static_argnames=("b_tile",))
def rotation_matrix_net(x, padded_params, k, *, b_tile=None):
    """x: (B, input_dim) f32 -> (B, k, k) rotation matrices (det = +1)."""
    B = x.shape[0]
    logits_pad = mlp_pallas(x, padded_params, b_tile=b_tile)   # (B, OUT_PAD)
    matrix = logits_pad[:, : k * k].reshape(B, k, k)

    # QR + determinant sign-fix (no clean Pallas equivalent for batched QR).
    q, _ = jnp.linalg.qr(matrix)             # reduced QR, q: (B, k, k)
    det = jnp.linalg.det(q)                  # (B,)

    if k % 2 == 0:
        # D @ q with D = eye, D[0,0] = sign  ->  flips the first ROW if det<0.
        sign = jnp.where(det < 0, -1.0, 1.0)                       # (B,)
        row_scale = jnp.ones((B, k), jnp.float32).at[:, 0].set(sign)
        q = q * row_scale[:, :, None]
    else:
        q = jnp.where(det[:, None, None] < 0, -q, q)
    return q


if __name__ == "__main__":
    # Small shapes consistent with the module's forward: x is (batch, input_dim).
    B, INPUT_DIM, K, HIDDEN = 2, 32, 4, 100

    key = jax.random.PRNGKey(0)
    k_params, k_x, k_x2 = jax.random.split(key, 3)
    params = init_params(k_params, INPUT_DIM, K, HIDDEN)
    padded = pad_params(params)
    x = jax.random.normal(k_x, (B, INPUT_DIM), jnp.float32)

    q = rotation_matrix_net(x, padded, K)
    q = jax.block_until_ready(q)

    # Sanity checks: shape, orthogonality, det = +1.
    assert q.shape == (B, K, K)
    eye = jnp.eye(K)
    ortho_err = jnp.max(jnp.abs(jnp.einsum("bij,bkj->bik", q, q) - eye))
    dets = jnp.linalg.det(q)
    assert float(ortho_err) < 1e-4, f"orthogonality error {ortho_err}"
    assert bool(jnp.all(jnp.abs(dets - 1.0) < 1e-4)), f"dets {dets}"

    # Multi-tile grid check: B=32 with an 8-row batch tile (grid of 4) vs the
    # pure-JAX f32 reference (loose tolerance: bf16 matmul operands).
    B2 = 32
    x2 = jax.random.normal(k_x2, (B2, INPUT_DIM), jnp.float32)
    logits = mlp_pallas(x2, padded, b_tile=8)[:, : K * K]
    logits = jax.block_until_ready(logits)
    ref = mlp_ref(x2, params)
    err = float(jnp.max(jnp.abs(logits - ref)))
    assert err < 1e-1, f"MLP error vs f32 reference: {err}"

    print("KERNEL_OK")
</pallas_src>

<mosaic_0001>
module attributes {stable_mosaic.version = 11 : i64} {
  func.func @_mlp_kernel(%arg0: i32, %arg1: memref<8x32xf32, #tpu.memory_space<vmem>>, %arg2: memref<32x128xbf16, #tpu.memory_space<vmem>>, %arg3: memref<1x128xf32, #tpu.memory_space<vmem>>, %arg4: memref<128x128xbf16, #tpu.memory_space<vmem>>, %arg5: memref<1x128xf32, #tpu.memory_space<vmem>>, %arg6: memref<128x128xbf16, #tpu.memory_space<vmem>>, %arg7: memref<1x128xf32, #tpu.memory_space<vmem>>, %arg8: memref<8x128xf32, #tpu.memory_space<vmem>>) attributes {dimension_semantics = [#tpu.dimension_semantics<parallel>], iteration_bounds = array<i64: 1>, scalar_prefetch = 0 : i64, scratch_operands = 0 : i64, tpu.core_type = #tpu.core_type<tc>, window_params = [{transform_indices = @transform_0, window_bounds = array<i64: 8, 32>}, {pipeline_mode = #tpu.pipeline_mode<synchronous>, transform_indices = @transform_1, window_bounds = array<i64: 32, 128>}, {pipeline_mode = #tpu.pipeline_mode<synchronous>, transform_indices = @transform_2, window_bounds = array<i64: 1, 128>}, {pipeline_mode = #tpu.pipeline_mode<synchronous>, transform_indices = @transform_3, window_bounds = array<i64: 128, 128>}, {pipeline_mode = #tpu.pipeline_mode<synchronous>, transform_indices = @transform_4, window_bounds = array<i64: 1, 128>}, {pipeline_mode = #tpu.pipeline_mode<synchronous>, transform_indices = @transform_5, window_bounds = array<i64: 128, 128>}, {pipeline_mode = #tpu.pipeline_mode<synchronous>, transform_indices = @transform_6, window_bounds = array<i64: 1, 128>}, {transform_indices = @transform_7, window_bounds = array<i64: 8, 128>}]} {
    %c0 = arith.constant 0 : index
    %c0_0 = arith.constant 0 : index
    %0 = vector.load %arg1[%c0, %c0_0] : memref<8x32xf32, #tpu.memory_space<vmem>>, vector<8x32xf32>
    %1 = arith.truncf %0 : vector<8x32xf32> to vector<8x32xbf16>
    %c0_1 = arith.constant 0 : index
    %c0_2 = arith.constant 0 : index
    %2 = vector.load %arg2[%c0_1, %c0_2] : memref<32x128xbf16, #tpu.memory_space<vmem>>, vector<32x128xbf16>
    %cst = arith.constant dense<0.000000e+00> : vector<8x128xf32>
    %3 = tpu.matmul %1, %2, %cst {dimension_numbers = #tpu.dot_dimension_numbers<[1], [0], [0], [1], [0, 0, 1, 1], [], []>} : vector<8x32xbf16>, vector<32x128xbf16>, vector<8x128xf32> -> vector<8x128xf32>
    %c0_3 = arith.constant 0 : index
    %c0_4 = arith.constant 0 : index
    %4 = vector.load %arg3[%c0_3, %c0_4] : memref<1x128xf32, #tpu.memory_space<vmem>>, vector<1x128xf32>
    %5 = vector.broadcast %4 : vector<1x128xf32> to vector<8x128xf32>
    %6 = arith.addf %3, %5 : vector<8x128xf32>
    %cst_5 = arith.constant 0.000000e+00 : f32
    %7 = vector.broadcast %cst_5 : f32 to vector<8x128xf32>
    %8 = arith.maximumf %6, %7 : vector<8x128xf32>
    %9 = arith.truncf %8 : vector<8x128xf32> to vector<8x128xbf16>
    %c0_6 = arith.constant 0 : index
    %c0_7 = arith.constant 0 : index
    %10 = vector.load %arg4[%c0_6, %c0_7] : memref<128x128xbf16, #tpu.memory_space<vmem>>, vector<128x128xbf16>
    %cst_8 = arith.constant dense<0.000000e+00> : vector<8x128xf32>
    %11 = tpu.matmul %9, %10, %cst_8 {dimension_numbers = #tpu.dot_dimension_numbers<[1], [0], [0], [1], [0, 0, 1, 1], [], []>} : vector<8x128xbf16>, vector<128x128xbf16>, vector<8x128xf32> -> vector<8x128xf32>
    %c0_9 = arith.constant 0 : index
    %c0_10 = arith.constant 0 : index
    %12 = vector.load %arg5[%c0_9, %c0_10] : memref<1x128xf32, #tpu.memory_space<vmem>>, vector<1x128xf32>
    %13 = vector.broadcast %12 : vector<1x128xf32> to vector<8x128xf32>
    %14 = arith.addf %11, %13 : vector<8x128xf32>
    %cst_11 = arith.constant 0.000000e+00 : f32
    %15 = vector.broadcast %cst_11 : f32 to vector<8x128xf32>
    %16 = arith.maximumf %14, %15 : vector<8x128xf32>
    %17 = arith.truncf %16 : vector<8x128xf32> to vector<8x128xbf16>
    %c0_12 = arith.constant 0 : index
    %c0_13 = arith.constant 0 : index
    %18 = vector.load %arg6[%c0_12, %c0_13] : memref<128x128xbf16, #tpu.memory_space<vmem>>, vector<128x128xbf16>
    %cst_14 = arith.constant dense<0.000000e+00> : vector<8x128xf32>
    %19 = tpu.matmul %17, %18, %cst_14 {dimension_numbers = #tpu.dot_dimension_numbers<[1], [0], [0], [1], [0, 0, 1, 1], [], []>} : vector<8x128xbf16>, vector<128x128xbf16>, vector<8x128xf32> -> vector<8x128xf32>
    %c0_15 = arith.constant 0 : index
    %c0_16 = arith.constant 0 : index
    %20 = vector.load %arg7[%c0_15, %c0_16] : memref<1x128xf32, #tpu.memory_space<vmem>>, vector<1x128xf32>
    %21 = vector.broadcast %20 : vector<1x128xf32> to vector<8x128xf32>
    %22 = arith.addf %19, %21 : vector<8x128xf32>
    %c0_17 = arith.constant 0 : index
    %c0_18 = arith.constant 0 : index
    %23 = vector.load %arg8[%c0_17, %c0_18] : memref<8x128xf32, #tpu.memory_space<vmem>>, vector<8x128xf32>
    tpu.vector_store %arg8[%c0_17, %c0_18], %22 {strides = array<i32>} : memref<8x128xf32, #tpu.memory_space<vmem>>, vector<8x128xf32>,
    return
  }
  func.func @transform_0(%arg0: i32) -> (i32, i32) {
    %c0_i32 = arith.constant 0 : i32
    %c0_i32_0 = arith.constant 0 : i32
    return %arg0, %c0_i32 : i32, i32
  }
  func.func @transform_1(%arg0: i32) -> (i32, i32) {
    %c0_i32 = arith.constant 0 : i32
    %c0_i32_0 = arith.constant 0 : i32
    %c0_i32_1 = arith.constant 0 : i32
    return %c0_i32, %c0_i32_0 : i32, i32
  }
  func.func @transform_2(%arg0: i32) -> (i32, i32) {
    %c0_i32 = arith.constant 0 : i32
    %c0_i32_0 = arith.constant 0 : i32
    %c0_i32_1 = arith.constant 0 : i32
    return %c0_i32, %c0_i32_0 : i32, i32
  }
  func.func @transform_3(%arg0: i32) -> (i32, i32) {
    %c0_i32 = arith.constant 0 : i32
    %c0_i32_0 = arith.constant 0 : i32
    %c0_i32_1 = arith.constant 0 : i32
    return %c0_i32, %c0_i32_0 : i32, i32
  }
  func.func @transform_4(%arg0: i32) -> (i32, i32) {
    %c0_i32 = arith.constant 0 : i32
    %c0_i32_0 = arith.constant 0 : i32
    %c0_i32_1 = arith.constant 0 : i32
    return %c0_i32, %c0_i32_0 : i32, i32
  }
  func.func @transform_5(%arg0: i32) -> (i32, i32) {
    %c0_i32 = arith.constant 0 : i32
    %c0_i32_0 = arith.constant 0 : i32
    %c0_i32_1 = arith.constant 0 : i32
    return %c0_i32, %c0_i32_0 : i32, i32
  }
  func.func @transform_6(%arg0: i32) -> (i32, i32) {
    %c0_i32 = arith.constant 0 : i32
    %c0_i32_0 = arith.constant 0 : i32
    %c0_i32_1 = arith.constant 0 : i32
    return %c0_i32, %c0_i32_0 : i32, i32
  }
  func.func @transform_7(%arg0: i32) -> (i32, i32) {
    %c0_i32 = arith.constant 0 : i32
    %c0_i32_0 = arith.constant 0 : i32
    return %arg0, %c0_i32 : i32, i32
  }
}

</mosaic_0001>

<llo_original>
// kernel: custom-call.9
$region0: #{custom-call.9}
  %s0 = inlined_call_operand.vmem [shape: f32[2,4,4], index: 0, kind: input, shape index: {}]
  %s1 = inlined_call_operand.vmem [shape: f32[2,4,4], index: 1, kind: output, shape index: {0}]
  %s2 = inlined_call_operand.vmem [shape: f32[2,4], index: 2, kind: output, shape index: {1}]
  %3 = xla_tuple %s1, %s2
  $region1: #{custom-call.9} parent=0
    #allocation0 [shape = 'u8[4096]{0}', space=vmem, size = 0x1000, scoped, tag = 'operand span for operand 0']
    #allocation1 [shape = 'u8[4096]{0}', space=vmem, size = 0x1000, scoped, tag = 'packed  for operand 0']
    #allocation2 [shape = 'u8[4096]{0}', space=vmem, size = 0x1000, scoped, tag = 'operand span for operand 1']
    #allocation3 [shape = 'u8[4096]{0}', space=vmem, size = 0x1000, scoped, tag = 'packed  for operand 1']
    #allocation4 [shape = 'u8[4096]{0}', space=vmem, size = 0x1000, scoped, tag = 'operand span for operand 2']
    #allocation5 [shape = 'u8[2048]{0}', space=vmem, size = 0x800, scoped, tag = 'packed  for operand 2']
    loop: start=0, step=1, limit=4
    $region2: #{custom-call.9} parent=1 // loop_pre_header
      _
    $region3: #{custom-call.9} parent=1 // loop_header
      %s5 = sphi 0, %s9
      %p6 = scmp.ge.s32.totalorder %s5, 4
      %s12 = sphi 0, %s31
      %s13 = sphi 0, %s27
      %s14 = sphi 0, %s23
      %s15 = sphi 0, %s12
      %s16 = sphi 0, %s13
      %s17 = sphi 0, %s14
      %s18 = sphi 0, %s15
      %s19 = sphi 0, %s16
      %s20 = sphi 0, %s17
      %s46 = sphi 0, %s48
      %s49 = sphi 0, %s46
      %s50 = sphi 0, %s49
      %s66 = sphi 0, %s50
    $region4: #{custom-call.9} parent=1 // loop_header_branch
      %8 = sbr.rel (%p6) target = $region8
    $region5: #{custom-call.9} parent=1 // loop_body
      %s10 = ssub.s32 %s5, 1
      %s11 = ssub.s32 %s5, 2
      %s21 = sadd.s32 1, %s14
      %p22 = scmp.ge.s32.totalorder %s21, 1
      %s23 = scalar_select %p22, 0, %s21
      %s24 = sadd.s32 1, %s13
      %s25 = scalar_select %p22, %s24, %s13
      %p26 = scmp.ge.s32.totalorder %s25, 1
      %s27 = scalar_select %p26, 0, %s25
      %s28 = sadd.s32 1, %s12
      %s29 = scalar_select %p26, %s28, %s12
      %p30 = scmp.ge.s32.totalorder %s29, 2
      %s31 = scalar_select %p30, 0, %s29
      %p32 = scmp.lt.s32.totalorder %s12, 0
      %s33 = ssub.s32 0, %s12
      %s34 = scalar_select %p32, %s33, %s12
      %s35 = sshrl.u32 %s34, 3
      %s36 = ssub.s32 0, %s35
      %s37 = scalar_select %p32, %s36, %s35
      %p38 = scmp.lt.s32.totalorder %s31, 0
      %s39 = ssub.s32 0, %s31
      %s40 = scalar_select %p38, %s39, %s31
      %s41 = sshrl.u32 %s40, 3
      %s42 = ssub.s32 0, %s41
      %s43 = scalar_select %p38, %s42, %s41
      %s44 = ssub.s32 %s37, %s43
      %p45 = scmp.eq.s32.totalorder %s44, 0
      %s47 = sadd.s32 %s46, 1
      %s48 = scalar_select %p45, %s46, %s47
      %p51 = pneg %p45
      %p52 = scmp.eq.s32.totalorder %s5, 1
      %p53 = por %p51, %p52
      %p54 = scmp.ne.s32.totalorder %s46, %s49
      %p55 = scmp.eq.s32.totalorder %s5, 0
      %p56 = por %p54, %p55
      %p57 = scmp.ne.s32.totalorder %s46, %s49
      %p58 = scmp.eq.s32.totalorder %s10, 1
      %p59 = por %p57, %p58
      %p60 = scmp.ne.s32.totalorder %s49, %s50
      %p61 = scmp.eq.s32.totalorder %s10, 0
      %p62 = por %p60, %p61
      %p63 = scmp.ne.s32.totalorder %s49, %s50
      %p64 = scmp.eq.s32.totalorder %s11, 1
      %p65 = por %p63, %p64
      %p67 = scmp.ne.s32.totalorder %s50, %s66
      %p68 = scmp.eq.s32.totalorder %s11, 0
      %p69 = por %p67, %p68
      %p70 = scmp.le.s32.totalorder 1, %s5
      %p71 = scmp.lt.s32.totalorder %s5, 3
      %p72 = pnand %p70, %p71
      %p73 = pneg %p72
      // Predicated region
      $region9: #{custom-call.9} parent=5 // pred_check
        _
      $region10: #{custom-call.9} parent=5 // pred_check_branch
        %75 = sbr.rel (%p72) target = $region12
      $region11: #{custom-call.9} parent=5 // pred_region
        %s76 = ssub.s32 %s5, 1
      $region12: #{custom-call.9} parent=5 // pred_fallthru
        _
      %p77 = scmp.lt.s32.totalorder %s5, 2
      // Predicated region
      $region13: #{custom-call.9} parent=5 // pred_check
        %p78 = pneg %p77
      $region14: #{custom-call.9} parent=5 // pred_check_branch
        %80 = sbr.rel (%p78) target = $region16
      $region15: #{custom-call.9} parent=5 // pred_region
        %s81 = sand.u32 %s5, 1
        %s82 = sand.u32 %s5, 1
        %s83 = smul.addr %s82, 4
        %s84 = scalar_lea.vmem [#allocation1], %s83
        %s85 = sadd.s32 %s14, %s13
        %s86 = sadd.s32 %s85, %s12
        %s87 = smul.addr %s86, 4
        %s88 = scalar_lea.vmem %s0, %s87
        // Predicated region
        $region17: #{custom-call.9} parent=15 // pred_check
          _
        $region18: #{custom-call.9} parent=15 // pred_check_branch
          %90 = sbr.rel (0) target = $region20
        $region19: #{custom-call.9} parent=15 // pred_region
          // Predicated region
          $region21: #{custom-call.9} parent=19 // pred_check
            _
          $region22: #{custom-call.9} parent=19 // pred_check_branch
            %92 = sbr.rel target = $region24
          $region23: #{custom-call.9} parent=19 // pred_region
            // Predicated region
            $region36: #{custom-call.9} parent=23 // pred_check
              _
            $region37: #{custom-call.9} parent=23 // pred_check_branch
              %107 = sbr.rel (0) target = $region39
            $region38: #{custom-call.9} parent=23 // pred_region
              loop: start=0, step=1, limit=1
              $region40: #{custom-call.9} parent=38 // loop_pre_header
                _
              $region41: #{custom-call.9} parent=38 // loop_header
                %s110 = sphi 0, %s114
                %p111 = scmp.ge.s32.totalorder %s110, 1
                %s115 = sphi %s88, %s88
                %s116 = sphi %s84, %s84
              $region42: #{custom-call.9} parent=38 // loop_header_branch
                %113 = sbr.rel (%p111) target = $region46
              $region43: #{custom-call.9} parent=38 // loop_body
                %v117 = vld [vmem:[%s115] sm:$0xf]
                %118 = vst [vmem:[%s116] sm:$0xf] %v117
              $region44: #{custom-call.9} parent=38 // loop_footer
                %s114 = sadd.s32 1, %s110
              $region45: #{custom-call.9} parent=38 // loop_footer_branch
                %109 = sbr.rel target = $region41
              $region46: #{custom-call.9} parent=38 // loop_exit
                _
            $region39: #{custom-call.9} parent=23 // pred_fallthru
              _
          $region24: #{custom-call.9} parent=19 // pred_fallthru
            _
          // Predicated region
          $region25: #{custom-call.9} parent=19 // pred_check
            _
          $region26: #{custom-call.9} parent=19 // pred_check_branch
            %94 = sbr.rel (0) target = $region28
          $region27: #{custom-call.9} parent=19 // pred_region
            loop: start=0, step=1, limit=1
            $region29: #{custom-call.9} parent=27 // loop_pre_header
              _
            $region30: #{custom-call.9} parent=27 // loop_header
              %s97 = sphi 0, %s101
              %p98 = scmp.ge.s32.totalorder %s97, 1
              %s102 = sphi %s88, %s88
              %s103 = sphi %s84, %s84
            $region31: #{custom-call.9} parent=27 // loop_header_branch
              %100 = sbr.rel (%p98) target = $region35
            $region32: #{custom-call.9} parent=27 // loop_body
              %v104 = vld [vmem:[%s102] sm:$0xf]
              %105 = vst [vmem:[%s103] sm:$0xf] %v104
            $region33: #{custom-call.9} parent=27 // loop_footer
              %s101 = sadd.s32 1, %s97
            $region34: #{custom-call.9} parent=27 // loop_footer_branch
              %96 = sbr.rel target = $region30
            $region35: #{custom-call.9} parent=27 // loop_exit
              _
          $region28: #{custom-call.9} parent=19 // pred_fallthru
            _
        $region20: #{custom-call.9} parent=15 // pred_fallthru
          _
        %119 = vnop
      $region16: #{custom-call.9} parent=5 // pred_fallthru
        _
      %p120 = scmp.le.s32.totalorder 1, %s5
      %p121 = scmp.lt.s32.totalorder %s5, 3
      %p122 = pnand %p120, %p121
      %p123 = pneg %p122
      // Predicated region
      $region47: #{custom-call.9} parent=5 // pred_check
        _
      $region48: #{custom-call.9} parent=5 // pred_check_branch
        %125 = sbr.rel (%p122) target = $region50
      $region49: #{custom-call.9} parent=5 // pred_region
        #allocation6 [shape = 'f32[4,128]{1,0}', space=vmem, size = 0x1000, scoped, tag = 'scratch for Householder reflectors']
        %s126 = ssub.s32 %s5, 1
        %s127 = sand.u32 %s10, 1
        %s128 = sand.u32 %s10, 1
        %s129 = smul.addr %s128, 4
        %s130 = scalar_lea.vmem [#allocation1], %s129
        %s131 = sand.u32 %s10, 1
        %s132 = sand.u32 %s10, 1
        %s133 = smul.addr %s132, 4
        %s134 = scalar_lea.vmem [#allocation1], %s133
        %s135 = sand.u32 %s10, 1
        %s136 = sand.u32 %s10, 1
        %s137 = smul.addr %s136, 4
        %s138 = scalar_lea.vmem [#allocation3], %s137
        %p139 = pneg %p62
        %p140 = pneg %p59
        %s141 = sand.u32 %s49, 1
        %s142 = sand.u32 %s49, 1
        %s143 = smul.addr %s142, 2
        %s144 = scalar_lea.vmem [#allocation5], %s143
        %s146 = sshllo.u32 0, 4
        %v147 = vld [vmem:[%s134] sm:%s146]
        %148 = vst [vmem:[#allocation0] sm:%s146] %v147
        %p149 = scmp.lt.s32.totalorder %s15, 0
        %s150 = ssub.s32 0, %s15
        %s151 = scalar_select %p149, %s150, %s15
        %s152 = sshrl.u32 %s151, 3
        %s153 = ssub.s32 0, %s152
        %s154 = scalar_select %p149, %s153, %s152
        %s155 = sand.u32 %s15, 7
        %s156 = scalar_lea.vmem [#allocation4], %s155
        %v157 = vld [vmem:[#allocation0] sm:$0xff]
        %158 = vst [vmem:[#allocation2] sm:$0xff] %v157
        %159 = vst [vmem:[%s156] sm:$0x1] 0.0
        loop: start=0, step=1, limit=4
        $region51: #{custom-call.9} parent=49 // loop_pre_header
          _
        $region52: #{custom-call.9} parent=49 // loop_header
          %s161 = sphi 0, %s165
          %p162 = scmp.ge.s32.totalorder %s161, 4
        $region53: #{custom-call.9} parent=49 // loop_header_branch
          %164 = sbr.rel (%p162) target = $region57
        $region54: #{custom-call.9} parent=49 // loop_body
          %v166 = vld [vmem:[#allocation2] sm:$0xff]
          %v167 = vlaneseq
          %v168 = vshrl.u32 %v167, 7
          %v170 = vstv %s161
          %vm171 = vcmp.gt.s32.totalorder %v168, %v170
          %vm172 = vcmp.lt.s32.totalorder %v168, 4
          %vm173 = vmand %vm171, %vm172
          %v174 = vsel %vm173, %v166, 0.0
          %v175 = vmul.f32 %v174, %v174
          %v176 = vrot.slane %v175, 4
          %v177 = vadd.f32 %v175, %v176
          %v178 = vrot.slane %v177, 2
          %v179 = vadd.f32 %v177, %v178
          %v180 = vrot.slane %v179, 1
          %v181 = vadd.f32 %v179, %v180
          %v182 = vrsqrt.pop %v181
          %v183 = vmul.f32 %v181, %v182
          %vm184 = vcmp.eq.f32.partialorder %v181, inf
          %v185 = vsel %vm184, %v181, %v183
          %vm186 = vcmp.eq.f32.partialorder %v181, 0.0
          %v187 = vand.u32 %v181, 2147483648
          %v188 = vsel %vm186, %v187, %v185
          %vm189 = vcmp.eq.f32.partialorder %v181, 0.0
          %s190 = sshrl.u32 %s161, 3
          %s191 = sand.u32 %s161, 7
          %s192 = smul.addr %s190, 8
          %s193 = sadd.s32 %s191, %s192
          %s194 = scalar_lea.vmem [#allocation2], %s193
          %v195 = vld [vmem:[%s194] ss:$0 sm:$0xff]
          %v196 = vand.u32 2147483647, %v195
          %v197 = vmax.f32 %v196, 0.0
          %v198 = vand.u32 2147483647, %v188
          %v199 = vmax.f32 %v197, %v198
          %v200 = vrcp.pop %v199
          %v201 = vmul.f32 %v196, %v200
          %v202 = vmul.f32 %v201, %v201
          %v203 = vrcp.pop %v199
          %v204 = vmul.f32 0.0, %v203
          %v205 = vmul.f32 %v204, %v204
          %v206 = vadd.f32 %v202, %v205
          %v207 = vrcp.pop %v199
          %v208 = vmul.f32 %v198, %v207
          %v209 = vmul.f32 %v208, %v208
          %v210 = vadd.f32 %v206, %v209
          %vm211 = vcmp.eq.f32.partialorder %v199, 0.0
          %v212 = vrsqrt.pop %v210
          %v213 = vmul.f32 %v210, %v212
          %vm214 = vcmp.eq.f32.partialorder %v210, inf
          %v215 = vsel %vm214, %v210, %v213
          %vm216 = vcmp.eq.f32.partialorder %v210, 0.0
          %v217 = vand.u32 %v210, 2147483648
          %v218 = vsel %vm216, %v217, %v215
          %v219 = vmul.f32 %v199, %v218
          %v220 = vsel %vm211, 0.0, %v219
          %vm221 = vcmp.lt.f32.partialorder %v195, 0.0
          %v222 = vxor.u32 %v220, 2147483648
          %v223 = vsel %vm221, %v220, %v222
          %v224 = vsub.f32 %v223, %v195
          %v225 = vrcp.pop %v223
          %v226 = vmul.f32 %v224, %v225
          %v227 = vsel %vm189, %v195, %v223
          %v228 = vsel %vm189, 0.0, %v226
          %v229 = vsub.f32 %v195, %v227
          %s230 = smov [#allocation2]
          %v231 = vlaneseq
          %v232 = vshrl.u32 %v231, 7
          %v233 = vmov %v232
          %v234 = vld [vmem:[%s230] sm:$0xff]
          %v236 = vstv %s161
          %vm237 = vcmp.gt.s32.totalorder %v233, %v236
          %vm238 = vcmp.lt.s32.totalorder %v233, 4
          %vm239 = vmand %vm237, %vm238
          %v240 = vsel %vm239, %v234, 0.0
          %v241 = vrcp.pop %v229
          %v242 = vmul.f32 %v240, %v241
          %v243 = vsel %vm189, 0.0, %v242
          %v244 = vstv %s161
          %v245 = vlaneseq
          %v246 = vand.u32 %v245, 127
          %vm247 = vcmp.eq.s32.totalorder %v246, %v244
          %v248 = vsel %vm247, %v243, 0.0
          %249 = vadd.xlane.f32.xlu0 %v248
          %v250 = vpop.xlane.xlu0 %249
          %251 = vst [vmem:[#allocation6] sm:$0xff] %v250
          %s252 = scalar_lea.vmem [#allocation6], %s161
          %253 = vst [vmem:[%s252] sm:$0x1] 1.0
          %v254 = vstv %s161
          %v255 = vlaneseq
          %v256 = vand.u32 %v255, 127
          %vm257 = vcmp.eq.s32.totalorder %v256, %v254
          %v258 = vsel %vm257, %v228, 0.0
          %259 = vadd.xlane.f32.xlu0 %v258
          %v260 = vpop.xlane.xlu0 %259
          %v261 = vstv %s161
          %v262 = vlaneseq
          %v263 = vand.u32 %v262, 127
          %vm264 = vcmp.eq.s32.totalorder %v263, %v261
          %v265 = vld [vmem:[%s156] ss:$0 sm:$0xff]
          %v266 = vsel %vm264, %v260, %v265
          %267 = vst [vmem:[%s156] sm:$0x1] %v266
          %s268 = smov [#allocation2]
          %s269 = smov [#allocation6]
          %v270 = vlaneseq
          %v271 = vshrl.u32 %v270, 7
          %v272 = vmov %v271
          %v274 = vld [vmem:[%s269] sm:$0xff]
          %v275 = vld [vmem:[%s268] sm:$0xff]
          %v276 = vmul.f32 %v274, %v275
          %vm277 = vcmp.lt.s32.totalorder %v272, 4
          %v278 = vsel %vm277, %v276, 0.0
          %v279 = vrot.slane %v278, 4
          %v280 = vadd.f32 %v278, %v279
          %v281 = vrot.slane %v280, 2
          %v282 = vadd.f32 %v280, %v281
          %v283 = vrot.slane %v282, 1
          %v284 = vadd.f32 %v282, %v283
          %s285 = smov %s268
          %s286 = smov %s269
          %v287 = vlaneseq
          %v288 = vshrl.u32 %v287, 7
          %v289 = vmov %v288
          %v290 = vmul.f32 %v284, %v260
          %v292 = vlaneseq
          %v293 = vand.u32 %v292, 127
          %v294 = vld [vmem:[%s286] sm:$0xff]
          %v295 = vmul.f32 %v294, %v290
          %v296 = vld [vmem:[%s285] sm:$0xff]
          %v297 = vstv %s161
          %vm298 = vcmp.gt.s32.totalorder %v293, %v297
          %v299 = vsub.f32 %v296, %v295
          %v300 = vsel %vm298, %v299, %v296
          %v301 = vstv %s161
          %v302 = vlaneseq
          %v303 = vand.u32 %v302, 127
          %vm304 = vcmp.eq.s32.totalorder %v303, %v301
          %v305 = vstv %s161
          %vm306 = vcmp.ge.s32.totalorder %v289, %v305
          %vm307 = vmand %vm304, %vm306
          %v308 = vsel %vm307, %v294, %v300
          %309 = vst [vmem:[%s285] sm:$0xff] %v308
          %s310 = scalar_lea.vmem %s285, %s161
          %v311 = vld [vmem:[%s310] ss:$0 sm:$0xff]
          %v312 = vstv %s161
          %v313 = vlaneseq
          %v314 = vand.u32 %v313, 127
          %vm315 = vcmp.eq.s32.totalorder %v314, %v312
          %v316 = vsel %vm315, %v227, %v311
          %317 = vst [vmem:[%s310] sm:$0x1] %v316
        $region55: #{custom-call.9} parent=49 // loop_footer
          %s165 = sadd.s32 1, %s161
        $region56: #{custom-call.9} parent=49 // loop_footer_branch
          %160 = sbr.rel target = $region52
        $region57: #{custom-call.9} parent=49 // loop_exit
          _
        %s319 = sshllo.u32 0, 4
        %v321 = vld [vmem:[#allocation2] sm:%s319]
        %s322 = sshllo.u32 0, 4
        %323 = vst [vmem:[%s138] sm:%s322] %v321
        %s325 = sshllo.u32 0, 2
        %v327 = vld [vmem:[#allocation4] sm:%s325]
        %s328 = sshllo.u32 0, 2
        %329 = vst [vmem:[%s144] sm:%s328] %v327
        %s330 = sand.u32 %s10, 1
        %s331 = sand.u32 %s10, 1
        %s332 = smul.addr %s331, 4
        %s333 = scalar_lea.vmem [#allocation3], %s332
        %s334 = sand.u32 %s49, 1
        %s335 = sand.u32 %s49, 1
        %s336 = smul.addr %s335, 2
        %s337 = scalar_lea.vmem [#allocation5], %s336
        %s338 = sadd.s32 %s17, %s16
        %s339 = sadd.s32 %s338, %s15
        %s340 = smul.addr %s339, 4
        %s341 = scalar_lea.vmem %s1, %s340
        // Predicated region
        $region58: #{custom-call.9} parent=49 // pred_check
          _
        $region59: #{custom-call.9} parent=49 // pred_check_branch
          %343 = sbr.rel (0) target = $region61
        $region60: #{custom-call.9} parent=49 // pred_region
          // Predicated region
          $region62: #{custom-call.9} parent=60 // pred_check
            _
          $region63: #{custom-call.9} parent=60 // pred_check_branch
            %345 = sbr.rel target = $region65
          $region64: #{custom-call.9} parent=60 // pred_region
            // Predicated region
            $region77: #{custom-call.9} parent=64 // pred_check
              _
            $region78: #{custom-call.9} parent=64 // pred_check_branch
              %360 = sbr.rel (0) target = $region80
            $region79: #{custom-call.9} parent=64 // pred_region
              loop: start=0, step=1, limit=1
              $region81: #{custom-call.9} parent=79 // loop_pre_header
                _
              $region82: #{custom-call.9} parent=79 // loop_header
                %s363 = sphi 0, %s367
                %p364 = scmp.ge.s32.totalorder %s363, 1
                %s368 = sphi %s333, %s333
                %s369 = sphi %s341, %s341
              $region83: #{custom-call.9} parent=79 // loop_header_branch
                %366 = sbr.rel (%p364) target = $region87
              $region84: #{custom-call.9} parent=79 // loop_body
                %v370 = vld [vmem:[%s368] sm:$0xf]
                %371 = vst [vmem:[%s369] sm:$0xf] %v370
              $region85: #{custom-call.9} parent=79 // loop_footer
                %s367 = sadd.s32 1, %s363
              $region86: #{custom-call.9} parent=79 // loop_footer_branch
                %362 = sbr.rel target = $region82
              $region87: #{custom-call.9} parent=79 // loop_exit
                _
            $region80: #{custom-call.9} parent=64 // pred_fallthru
              _
          $region65: #{custom-call.9} parent=60 // pred_fallthru
            _
          // Predicated region
          $region66: #{custom-call.9} parent=60 // pred_check
            _
          $region67: #{custom-call.9} parent=60 // pred_check_branch
            %347 = sbr.rel (0) target = $region69
          $region68: #{custom-call.9} parent=60 // pred_region
            loop: start=0, step=1, limit=1
            $region70: #{custom-call.9} parent=68 // loop_pre_header
              _
            $region71: #{custom-call.9} parent=68 // loop_header
              %s350 = sphi 0, %s354
              %p351 = scmp.ge.s32.totalorder %s350, 1
              %s355 = sphi %s333, %s333
              %s356 = sphi %s341, %s341
            $region72: #{custom-call.9} parent=68 // loop_header_branch
              %353 = sbr.rel (%p351) target = $region76
            $region73: #{custom-call.9} parent=68 // loop_body
              %v357 = vld [vmem:[%s355] sm:$0xf]
              %358 = vst [vmem:[%s356] sm:$0xf] %v357
            $region74: #{custom-call.9} parent=68 // loop_footer
              %s354 = sadd.s32 1, %s350
            $region75: #{custom-call.9} parent=68 // loop_footer_branch
              %349 = sbr.rel target = $region71
            $region76: #{custom-call.9} parent=68 // loop_exit
              _
          $region69: #{custom-call.9} parent=60 // pred_fallthru
            _
        $region61: #{custom-call.9} parent=49 // pred_fallthru
          _
        %372 = vnop
        // Predicated region
        $region88: #{custom-call.9} parent=49 // pred_check
          %p373 = pneg %p59
        $region89: #{custom-call.9} parent=49 // pred_check_branch
          %375 = sbr.rel (%p373) target = $region91
        $region90: #{custom-call.9} parent=49 // pred_region
          %p376 = scmp.lt.s32.totalorder %s15, 0
          %s377 = ssub.s32 0, %s15
          %s378 = scalar_select %p376, %s377, %s15
          %s379 = sshrl.u32 %s378, 3
          %s380 = ssub.s32 0, %s379
          %s381 = scalar_select %p376, %s380, %s379
          %s382 = smul.addr %s381, 2
          %s383 = scalar_lea.vmem %s2, %s382
          // Predicated region
          $region92: #{custom-call.9} parent=90 // pred_check
            _
          $region93: #{custom-call.9} parent=90 // pred_check_branch
            %385 = sbr.rel (0) target = $region95
          $region94: #{custom-call.9} parent=90 // pred_region
            // Predicated region
            $region96: #{custom-call.9} parent=94 // pred_check
              _
            $region97: #{custom-call.9} parent=94 // pred_check_branch
              %387 = sbr.rel target = $region99
            $region98: #{custom-call.9} parent=94 // pred_region
              // Predicated region
              $region111: #{custom-call.9} parent=98 // pred_check
                _
              $region112: #{custom-call.9} parent=98 // pred_check_branch
                %402 = sbr.rel (0) target = $region114
              $region113: #{custom-call.9} parent=98 // pred_region
                loop: start=0, step=1, limit=1
                $region115: #{custom-call.9} parent=113 // loop_pre_header
                  _
                $region116: #{custom-call.9} parent=113 // loop_header
                  %s405 = sphi 0, %s409
                  %p406 = scmp.ge.s32.totalorder %s405, 1
                  %s410 = sphi %s337, %s337
                  %s411 = sphi %s383, %s383
                $region117: #{custom-call.9} parent=113 // loop_header_branch
                  %408 = sbr.rel (%p406) target = $region121
                $region118: #{custom-call.9} parent=113 // loop_body
                  %v412 = vld [vmem:[%s410] sm:$0x3]
                  %413 = vst [vmem:[%s411] sm:$0x3] %v412
                $region119: #{custom-call.9} parent=113 // loop_footer
                  %s409 = sadd.s32 1, %s405
                $region120: #{custom-call.9} parent=113 // loop_footer_branch
                  %404 = sbr.rel target = $region116
                $region121: #{custom-call.9} parent=113 // loop_exit
                  _
              $region114: #{custom-call.9} parent=98 // pred_fallthru
                _
            $region99: #{custom-call.9} parent=94 // pred_fallthru
              _
            // Predicated region
            $region100: #{custom-call.9} parent=94 // pred_check
              _
            $region101: #{custom-call.9} parent=94 // pred_check_branch
              %389 = sbr.rel (0) target = $region103
            $region102: #{custom-call.9} parent=94 // pred_region
              loop: start=0, step=1, limit=1
              $region104: #{custom-call.9} parent=102 // loop_pre_header
                _
              $region105: #{custom-call.9} parent=102 // loop_header
                %s392 = sphi 0, %s396
                %p393 = scmp.ge.s32.totalorder %s392, 1
                %s397 = sphi %s337, %s337
                %s398 = sphi %s383, %s383
              $region106: #{custom-call.9} parent=102 // loop_header_branch
                %395 = sbr.rel (%p393) target = $region110
              $region107: #{custom-call.9} parent=102 // loop_body
                %v399 = vld [vmem:[%s397] sm:$0x3]
                %400 = vst [vmem:[%s398] sm:$0x3] %v399
              $region108: #{custom-call.9} parent=102 // loop_footer
                %s396 = sadd.s32 1, %s392
              $region109: #{custom-call.9} parent=102 // loop_footer_branch
                %391 = sbr.rel target = $region105
              $region110: #{custom-call.9} parent=102 // loop_exit
                _
            $region103: #{custom-call.9} parent=94 // pred_fallthru
              _
          $region95: #{custom-call.9} parent=90 // pred_fallthru
            _
          %414 = vnop
        $region91: #{custom-call.9} parent=49 // pred_fallthru
          _
      $region50: #{custom-call.9} parent=5 // pred_fallthru
        _
      %p415 = scmp.le.s32.totalorder 2, %s5
      // Predicated region
      $region122: #{custom-call.9} parent=5 // pred_check
        %p416 = pneg %p415
      $region123: #{custom-call.9} parent=5 // pred_check_branch
        %418 = sbr.rel (%p416) target = $region125
      $region124: #{custom-call.9} parent=5 // pred_region
        %s419 = ssub.s32 %s5, 2
        %s420 = sand.u32 %s11, 1
        %s421 = sand.u32 %s11, 1
        %s422 = smul.addr %s421, 4
        %s423 = scalar_lea.vmem [#allocation3], %s422
        // Predicated region
        $region126: #{custom-call.9} parent=124 // pred_check
          %p424 = pneg %p65
        $region127: #{custom-call.9} parent=124 // pred_check_branch
          %426 = sbr.rel (%p424) target = $region129
        $region128: #{custom-call.9} parent=124 // pred_region
          %s427 = sand.u32 %s50, 1
          %s428 = sand.u32 %s50, 1
          %s429 = smul.addr %s428, 2
          %s430 = scalar_lea.vmem [#allocation5], %s429
        $region129: #{custom-call.9} parent=124 // pred_fallthru
          _
      $region125: #{custom-call.9} parent=5 // pred_fallthru
        _
    $region6: #{custom-call.9} parent=1 // loop_footer
      %s9 = sadd.s32 1, %s5
    $region7: #{custom-call.9} parent=1 // loop_footer_branch
      %4 = sbr.rel target = $region3
    $region8: #{custom-call.9} parent=1 // loop_exit
      _

// kernel: custom-call.11
$region0: #{custom-call.11}
  %s0 = inlined_call_operand.vmem [shape: f32[2,4,4], index: 0, kind: input, shape index: {}]
  %s1 = inlined_call_operand.vmem [shape: f32[2,4,4], index: 1, kind: output, shape index: {}]
  $region1: #{custom-call.11} parent=0
    #allocation0 [shape = 'u8[4096]{0}', space=vmem, size = 0x1000, scoped, tag = 'operand span for operand 0']
    #allocation1 [shape = 'u8[4096]{0}', space=vmem, size = 0x1000, scoped, tag = 'packed  for operand 0']
    #allocation2 [shape = 'u8[4096]{0}', space=vmem, size = 0x1000, scoped, tag = 'operand span for operand 1']
    #allocation3 [shape = 'u8[4096]{0}', space=vmem, size = 0x1000, scoped, tag = 'packed  for operand 1']
    loop: start=0, step=1, limit=4
    $region2: #{custom-call.11} parent=1 // loop_pre_header
      _
    $region3: #{custom-call.11} parent=1 // loop_header
      %s3 = sphi 0, %s7
      %p4 = scmp.ge.s32.totalorder %s3, 4
    $region4: #{custom-call.11} parent=1 // loop_header_branch
      %6 = sbr.rel (%p4) target = $region8
    $region5: #{custom-call.11} parent=1 // loop_body
      %s8 = ssub.s32 %s3, 1
      %s9 = ssub.s32 %s3, 2
      %s10 = sadd.s32 %s3, 1
      %p11 = scmp.le.s32.totalorder 1, %s3
      %p12 = scmp.lt.s32.totalorder %s3, 3
      %p13 = pnand %p11, %p12
      %p14 = pneg %p13
      // Predicated region
      $region9: #{custom-call.11} parent=5 // pred_check
        _
      $region10: #{custom-call.11} parent=5 // pred_check_branch
        %16 = sbr.rel (%p13) target = $region12
      $region11: #{custom-call.11} parent=5 // pred_region
        %s17 = ssub.s32 %s3, 1
      $region12: #{custom-call.11} parent=5 // pred_fallthru
        _
      %p18 = scmp.lt.s32.totalorder %s3, 2
      // Predicated region
      $region13: #{custom-call.11} parent=5 // pred_check
        %p19 = pneg %p18
      $region14: #{custom-call.11} parent=5 // pred_check_branch
        %21 = sbr.rel (%p19) target = $region16
      $region15: #{custom-call.11} parent=5 // pred_region
        %s22 = sand.u32 %s3, 1
        %s23 = sand.u32 %s3, 1
        %s24 = smul.addr %s23, 4
        %s25 = scalar_lea.vmem [#allocation1], %s24
        %s26 = smul.addr %s3, 4
        %s27 = scalar_lea.vmem %s0, %s26
        // Predicated region
        $region17: #{custom-call.11} parent=15 // pred_check
          _
        $region18: #{custom-call.11} parent=15 // pred_check_branch
          %29 = sbr.rel (0) target = $region20
        $region19: #{custom-call.11} parent=15 // pred_region
          // Predicated region
          $region21: #{custom-call.11} parent=19 // pred_check
            _
          $region22: #{custom-call.11} parent=19 // pred_check_branch
            %31 = sbr.rel target = $region24
          $region23: #{custom-call.11} parent=19 // pred_region
            // Predicated region
            $region36: #{custom-call.11} parent=23 // pred_check
              _
            $region37: #{custom-call.11} parent=23 // pred_check_branch
              %46 = sbr.rel (0) target = $region39
            $region38: #{custom-call.11} parent=23 // pred_region
              loop: start=0, step=1, limit=1
              $region40: #{custom-call.11} parent=38 // loop_pre_header
                _
              $region41: #{custom-call.11} parent=38 // loop_header
                %s49 = sphi 0, %s53
                %p50 = scmp.ge.s32.totalorder %s49, 1
                %s54 = sphi %s27, %s27
                %s55 = sphi %s25, %s25
              $region42: #{custom-call.11} parent=38 // loop_header_branch
                %52 = sbr.rel (%p50) target = $region46
              $region43: #{custom-call.11} parent=38 // loop_body
                %v56 = vld [vmem:[%s54] sm:$0xf]
                %57 = vst [vmem:[%s55] sm:$0xf] %v56
              $region44: #{custom-call.11} parent=38 // loop_footer
                %s53 = sadd.s32 1, %s49
              $region45: #{custom-call.11} parent=38 // loop_footer_branch
                %48 = sbr.rel target = $region41
              $region46: #{custom-call.11} parent=38 // loop_exit
                _
            $region39: #{custom-call.11} parent=23 // pred_fallthru
              _
          $region24: #{custom-call.11} parent=19 // pred_fallthru
            _
          // Predicated region
          $region25: #{custom-call.11} parent=19 // pred_check
            _
          $region26: #{custom-call.11} parent=19 // pred_check_branch
            %33 = sbr.rel (0) target = $region28
          $region27: #{custom-call.11} parent=19 // pred_region
            loop: start=0, step=1, limit=1
            $region29: #{custom-call.11} parent=27 // loop_pre_header
              _
            $region30: #{custom-call.11} parent=27 // loop_header
              %s36 = sphi 0, %s40
              %p37 = scmp.ge.s32.totalorder %s36, 1
              %s41 = sphi %s27, %s27
              %s42 = sphi %s25, %s25
            $region31: #{custom-call.11} parent=27 // loop_header_branch
              %39 = sbr.rel (%p37) target = $region35
            $region32: #{custom-call.11} parent=27 // loop_body
              %v43 = vld [vmem:[%s41] sm:$0xf]
              %44 = vst [vmem:[%s42] sm:$0xf] %v43
            $region33: #{custom-call.11} parent=27 // loop_footer
              %s40 = sadd.s32 1, %s36
            $region34: #{custom-call.11} parent=27 // loop_footer_branch
              %35 = sbr.rel target = $region30
            $region35: #{custom-call.11} parent=27 // loop_exit
              _
          $region28: #{custom-call.11} parent=19 // pred_fallthru
            _
        $region20: #{custom-call.11} parent=15 // pred_fallthru
          _
        %58 = vnop
      $region16: #{custom-call.11} parent=5 // pred_fallthru
        _
      %p59 = scmp.le.s32.totalorder 1, %s3
      %p60 = scmp.lt.s32.totalorder %s3, 3
      %p61 = pnand %p59, %p60
      %p62 = pneg %p61
      // Predicated region
      $region47: #{custom-call.11} parent=5 // pred_check
        _
      $region48: #{custom-call.11} parent=5 // pred_check_branch
        %64 = sbr.rel (%p61) target = $region50
      $region49: #{custom-call.11} parent=5 // pred_region
        %s65 = ssub.s32 %s3, 1
        %s66 = sand.u32 %s8, 1
        %s67 = sand.u32 %s8, 1
        %s68 = smul.addr %s67, 4
        %s69 = scalar_lea.vmem [#allocation1], %s68
        %s70 = sand.u32 %s8, 1
        %s71 = sand.u32 %s8, 1
        %s72 = smul.addr %s71, 4
        %s73 = scalar_lea.vmem [#allocation1], %s72
        %s74 = sand.u32 %s8, 1
        %s75 = sand.u32 %s8, 1
        %s76 = smul.addr %s75, 4
        %s77 = scalar_lea.vmem [#allocation3], %s76
        %s79 = sshllo.u32 0, 4
        %v80 = vld [vmem:[%s73] sm:%s79]
        %81 = vst [vmem:[#allocation0] sm:%s79] %v80
        %v82 = vlaneseq
        %v83 = vand.u32 %v82, 127
        %v84 = vlaneseq
        %v85 = vshrl.u32 %v84, 7
        %vm87 = vcmp.eq.s32.totalorder %v83, %v85
        %v88 = vld [vmem:[#allocation0] sm:$0xff]
        %v89 = vlaneseq
        %v90 = vand.u32 %v89, 127
        %vm91 = vcmp.eq.s32.totalorder %v90, 0
        %v92 = vsel %vm91, %v88, 1.0
        %v93 = vsel %vm87, %v92, 0.0
        %s94 = scalar_lea.vmem [#allocation0], 1
        %v95 = vld [vmem:[%s94] ss:$0 sm:$0xff]
        %vm96 = vcmask 31744
        %v97 = vsel %vm96, %v95, 0.0
        %v98 = vlaneseq
        %v99 = vand.u32 %v98, 127
        %vm100 = vcmp.eq.s32.totalorder %v99, 1
        %v101 = vmul.f32 %v97, %v93
        %102 = vadd.xlane.f32.xlu0 %v101
        %v103 = vpop.xlane.xlu0 %102
        %v104 = vsel %vm100, %v103, %v93
        %s105 = scalar_lea.vmem [#allocation0], 2
        %v106 = vld [vmem:[%s105] ss:$0 sm:$0xff]
        %vm107 = vcmask 31744
        %v108 = vsel %vm107, %v106, 0.0
        %v109 = vlaneseq
        %v110 = vand.u32 %v109, 127
        %vm111 = vcmp.eq.s32.totalorder %v110, 2
        %v112 = vmul.f32 %v108, %v104
        %113 = vadd.xlane.f32.xlu0 %v112
        %v114 = vpop.xlane.xlu0 %113
        %v115 = vsel %vm111, %v114, %v104
        %s116 = scalar_lea.vmem [#allocation0], 3
        %v117 = vld [vmem:[%s116] ss:$0 sm:$0xff]
        %vm118 = vcmask 31744
        %v119 = vsel %vm118, %v117, 0.0
        %v120 = vlaneseq
        %v121 = vand.u32 %v120, 127
        %vm122 = vcmp.eq.s32.totalorder %v121, 3
        %v123 = vmul.f32 %v119, %v115
        %124 = vadd.xlane.f32.xlu0 %v123
        %v125 = vpop.xlane.xlu0 %124
        %v126 = vsel %vm122, %v125, %v115
        %127 = vst [vmem:[#allocation2] sm:$0xff] %v126
        %s129 = sshllo.u32 0, 4
        %v131 = vld [vmem:[#allocation2] sm:%s129]
        %s132 = sshllo.u32 0, 4
        %133 = vst [vmem:[%s77] sm:%s132] %v131
        %s134 = sand.u32 %s8, 1
        %s135 = sand.u32 %s8, 1
        %s136 = smul.addr %s135, 4
        %s137 = scalar_lea.vmem [#allocation3], %s136
        %s138 = smul.addr %s8, 4
        %s139 = scalar_lea.vmem %s1, %s138
        // Predicated region
        $region51: #{custom-call.11} parent=49 // pred_check
          _
        $region52: #{custom-call.11} parent=49 // pred_check_branch
          %141 = sbr.rel (0) target = $region54
        $region53: #{custom-call.11} parent=49 // pred_region
          // Predicated region
          $region55: #{custom-call.11} parent=53 // pred_check
            _
          $region56: #{custom-call.11} parent=53 // pred_check_branch
            %143 = sbr.rel target = $region58
          $region57: #{custom-call.11} parent=53 // pred_region
            // Predicated region
            $region70: #{custom-call.11} parent=57 // pred_check
              _
            $region71: #{custom-call.11} parent=57 // pred_check_branch
              %158 = sbr.rel (0) target = $region73
            $region72: #{custom-call.11} parent=57 // pred_region
              loop: start=0, step=1, limit=1
              $region74: #{custom-call.11} parent=72 // loop_pre_header
                _
              $region75: #{custom-call.11} parent=72 // loop_header
                %s161 = sphi 0, %s165
                %p162 = scmp.ge.s32.totalorder %s161, 1
                %s166 = sphi %s137, %s137
                %s167 = sphi %s139, %s139
              $region76: #{custom-call.11} parent=72 // loop_header_branch
                %164 = sbr.rel (%p162) target = $region80
              $region77: #{custom-call.11} parent=72 // loop_body
                %v168 = vld [vmem:[%s166] sm:$0xf]
                %169 = vst [vmem:[%s167] sm:$0xf] %v168
              $region78: #{custom-call.11} parent=72 // loop_footer
                %s165 = sadd.s32 1, %s161
              $region79: #{custom-call.11} parent=72 // loop_footer_branch
                %160 = sbr.rel target = $region75
              $region80: #{custom-call.11} parent=72 // loop_exit
                _
            $region73: #{custom-call.11} parent=57 // pred_fallthru
              _
          $region58: #{custom-call.11} parent=53 // pred_fallthru
            _
          // Predicated region
          $region59: #{custom-call.11} parent=53 // pred_check
            _
          $region60: #{custom-call.11} parent=53 // pred_check_branch
            %145 = sbr.rel (0) target = $region62
          $region61: #{custom-call.11} parent=53 // pred_region
            loop: start=0, step=1, limit=1
            $region63: #{custom-call.11} parent=61 // loop_pre_header
              _
            $region64: #{custom-call.11} parent=61 // loop_header
              %s148 = sphi 0, %s152
              %p149 = scmp.ge.s32.totalorder %s148, 1
              %s153 = sphi %s137, %s137
              %s154 = sphi %s139, %s139
            $region65: #{custom-call.11} parent=61 // loop_header_branch
              %151 = sbr.rel (%p149) target = $region69
            $region66: #{custom-call.11} parent=61 // loop_body
              %v155 = vld [vmem:[%s153] sm:$0xf]
              %156 = vst [vmem:[%s154] sm:$0xf] %v155
            $region67: #{custom-call.11} parent=61 // loop_footer
              %s152 = sadd.s32 1, %s148
            $region68: #{custom-call.11} parent=61 // loop_footer_branch
              %147 = sbr.rel target = $region64
            $region69: #{custom-call.11} parent=61 // loop_exit
              _
          $region62: #{custom-call.11} parent=53 // pred_fallthru
            _
        $region54: #{custom-call.11} parent=49 // pred_fallthru
          _
        %170 = vnop
      $region50: #{custom-call.11} parent=5 // pred_fallthru
        _
      %p171 = scmp.le.s32.totalorder 2, %s3
      // Predicated region
      $region81: #{custom-call.11} parent=5 // pred_check
        %p172 = pneg %p171
      $region82: #{custom-call.11} parent=5 // pred_check_branch
        %174 = sbr.rel (%p172) target = $region84
      $region83: #{custom-call.11} parent=5 // pred_region
        %s175 = ssub.s32 %s3, 2
        %s176 = sand.u32 %s9, 1
        %s177 = sand.u32 %s9, 1
        %s178 = smul.addr %s177, 4
        %s179 = scalar_lea.vmem [#allocation3], %s178
      $region84: #{custom-call.11} parent=5 // pred_fallthru
        _
    $region6: #{custom-call.11} parent=1 // loop_footer
      %s7 = sadd.s32 1, %s3
    $region7: #{custom-call.11} parent=1 // loop_footer_branch
      %2 = sbr.rel target = $region3
    $region8: #{custom-call.11} parent=1 // loop_exit
      _

// kernel: custom-call.12
$region0: #{custom-call.12}
  %s0 = inlined_call_operand.vmem [shape: f32[2,4,4], index: 0, kind: input, shape index: {}]
  %s1 = inlined_call_operand.vmem [shape: f32[2,4,4], index: 1, kind: output, shape index: {0}]
  %s2 = inlined_call_operand.vmem [shape: s32[2,4], index: 2, kind: output, shape index: {1}]
  %s3 = inlined_call_operand.hbm [shape: s32[2,4], index: 3, kind: output, shape index: {2}]
  %4 = xla_tuple %s1, %s2, %s3
  $region1: #{custom-call.12} parent=0
    #allocation0 [shape = 'u8[4096]{0}', space=vmem, size = 0x1000, scoped, tag = 'operand span for operand 0']
    #allocation1 [shape = 'u8[4096]{0}', space=vmem, size = 0x1000, scoped, tag = 'packed  for operand 0']
    #allocation2 [shape = 'u8[4096]{0}', space=vmem, size = 0x1000, scoped, tag = 'operand span for operand 1']
    #allocation3 [shape = 'u8[4096]{0}', space=vmem, size = 0x1000, scoped, tag = 'packed  for operand 1']
    #allocation4 [shape = 'u8[4096]{0}', space=vmem, size = 0x1000, scoped, tag = 'operand span for operand 2']
    #allocation5 [shape = 'u8[2048]{0}', space=vmem, size = 0x800, scoped, tag = 'packed  for operand 2']
    #allocation6 [shape = 'u8[4096]{0}', space=vmem, size = 0x1000, scoped, tag = 'operand span for operand 3']
    #allocation7 [shape = 'u8[2048]{0}', space=vmem, size = 0x800, scoped, tag = 'packed  for operand 3']
    #allocation8 [shape = 's32[2]{0}', space=sflag, size = 0x8, scoped, tag = 'scoped memory for custom-call.12']
    %5 = vsyncpa [#allocation8], 0
    %s6 = scalar_lea.sflag [#allocation8], 1
    %7 = vsyncpa %s6, 0
    loop: start=0, step=1, limit=4
    $region2: #{custom-call.12} parent=1 // loop_pre_header
      _
    $region3: #{custom-call.12} parent=1 // loop_header
      %s9 = sphi 0, %s13
      %p10 = scmp.ge.s32.totalorder %s9, 4
      %s21 = sphi 0, %s23
      %s24 = sphi 0, %s21
      %s25 = sphi 0, %s24
      %s41 = sphi 0, %s25
      %s49 = sphi 0, %s51
      %s52 = sphi 0, %s49
      %s53 = sphi 0, %s52
      %s69 = sphi 0, %s53
    $region4: #{custom-call.12} parent=1 // loop_header_branch
      %12 = sbr.rel (%p10) target = $region8
    $region5: #{custom-call.12} parent=1 // loop_body
      %s14 = ssub.s32 %s9, 1
      %s15 = ssub.s32 %s9, 2
      %s16 = sadd.s32 %s9, 1
      %s17 = sshrl.u32 %s9, 3
      %s18 = sshrl.u32 %s16, 3
      %s19 = ssub.s32 %s17, %s18
      %p20 = scmp.eq.s32.totalorder %s19, 0
      %s22 = sadd.s32 %s21, 1
      %s23 = scalar_select %p20, %s21, %s22
      %p26 = pneg %p20
      %p27 = scmp.eq.s32.totalorder %s9, 1
      %p28 = por %p26, %p27
      %p29 = scmp.ne.s32.totalorder %s21, %s24
      %p30 = scmp.eq.s32.totalorder %s9, 0
      %p31 = por %p29, %p30
      %p32 = scmp.ne.s32.totalorder %s21, %s24
      %p33 = scmp.eq.s32.totalorder %s14, 1
      %p34 = por %p32, %p33
      %p35 = scmp.ne.s32.totalorder %s24, %s25
      %p36 = scmp.eq.s32.totalorder %s14, 0
      %p37 = por %p35, %p36
      %p38 = scmp.ne.s32.totalorder %s24, %s25
      %p39 = scmp.eq.s32.totalorder %s15, 1
      %p40 = por %p38, %p39
      %p42 = scmp.ne.s32.totalorder %s25, %s41
      %p43 = scmp.eq.s32.totalorder %s15, 0
      %p44 = por %p42, %p43
      %s45 = sshrl.u32 %s9, 3
      %s46 = sshrl.u32 %s16, 3
      %s47 = ssub.s32 %s45, %s46
      %p48 = scmp.eq.s32.totalorder %s47, 0
      %s50 = sadd.s32 %s49, 1
      %s51 = scalar_select %p48, %s49, %s50
      %p54 = pneg %p48
      %p55 = scmp.eq.s32.totalorder %s9, 1
      %p56 = por %p54, %p55
      %p57 = scmp.ne.s32.totalorder %s49, %s52
      %p58 = scmp.eq.s32.totalorder %s9, 0
      %p59 = por %p57, %p58
      %p60 = scmp.ne.s32.totalorder %s49, %s52
      %p61 = scmp.eq.s32.totalorder %s14, 1
      %p62 = por %p60, %p61
      %p63 = scmp.ne.s32.totalorder %s52, %s53
      %p64 = scmp.eq.s32.totalorder %s14, 0
      %p65 = por %p63, %p64
      %p66 = scmp.ne.s32.totalorder %s52, %s53
      %p67 = scmp.eq.s32.totalorder %s15, 1
      %p68 = por %p66, %p67
      %p70 = scmp.ne.s32.totalorder %s53, %s69
      %p71 = scmp.eq.s32.totalorder %s15, 0
      %p72 = por %p70, %p71
      %p73 = scmp.le.s32.totalorder 1, %s9
      %p74 = scmp.lt.s32.totalorder %s9, 3
      %p75 = pnand %p73, %p74
      %p76 = pneg %p75
      // Predicated region
      $region9: #{custom-call.12} parent=5 // pred_check
        _
      $region10: #{custom-call.12} parent=5 // pred_check_branch
        %78 = sbr.rel (%p75) target = $region12
      $region11: #{custom-call.12} parent=5 // pred_region
        %s79 = ssub.s32 %s9, 1
      $region12: #{custom-call.12} parent=5 // pred_fallthru
        _
      %p80 = scmp.lt.s32.totalorder %s9, 2
      // Predicated region
      $region13: #{custom-call.12} parent=5 // pred_check
        %p81 = pneg %p80
      $region14: #{custom-call.12} parent=5 // pred_check_branch
        %83 = sbr.rel (%p81) target = $region16
      $region15: #{custom-call.12} parent=5 // pred_region
        %s84 = sand.u32 %s9, 1
        %s85 = sand.u32 %s9, 1
        %s86 = smul.addr %s85, 4
        %s87 = scalar_lea.vmem [#allocation1], %s86
        %s88 = smul.addr %s9, 4
        %s89 = scalar_lea.vmem %s0, %s88
        // Predicated region
        $region17: #{custom-call.12} parent=15 // pred_check
          _
        $region18: #{custom-call.12} parent=15 // pred_check_branch
          %91 = sbr.rel (0) target = $region20
        $region19: #{custom-call.12} parent=15 // pred_region
          // Predicated region
          $region21: #{custom-call.12} parent=19 // pred_check
            _
          $region22: #{custom-call.12} parent=19 // pred_check_branch
            %93 = sbr.rel target = $region24
          $region23: #{custom-call.12} parent=19 // pred_region
            // Predicated region
            $region36: #{custom-call.12} parent=23 // pred_check
              _
            $region37: #{custom-call.12} parent=23 // pred_check_branch
              %108 = sbr.rel (0) target = $region39
            $region38: #{custom-call.12} parent=23 // pred_region
              loop: start=0, step=1, limit=1
              $region40: #{custom-call.12} parent=38 // loop_pre_header
                _
              $region41: #{custom-call.12} parent=38 // loop_header
                %s111 = sphi 0, %s115
                %p112 = scmp.ge.s32.totalorder %s111, 1
                %s116 = sphi %s89, %s89
                %s117 = sphi %s87, %s87
              $region42: #{custom-call.12} parent=38 // loop_header_branch
                %114 = sbr.rel (%p112) target = $region46
              $region43: #{custom-call.12} parent=38 // loop_body
                %v118 = vld [vmem:[%s116] sm:$0xf]
                %119 = vst [vmem:[%s117] sm:$0xf] %v118
              $region44: #{custom-call.12} parent=38 // loop_footer
                %s115 = sadd.s32 1, %s111
              $region45: #{custom-call.12} parent=38 // loop_footer_branch
                %110 = sbr.rel target = $region41
              $region46: #{custom-call.12} parent=38 // loop_exit
                _
            $region39: #{custom-call.12} parent=23 // pred_fallthru
              _
          $region24: #{custom-call.12} parent=19 // pred_fallthru
            _
          // Predicated region
          $region25: #{custom-call.12} parent=19 // pred_check
            _
          $region26: #{custom-call.12} parent=19 // pred_check_branch
            %95 = sbr.rel (0) target = $region28
          $region27: #{custom-call.12} parent=19 // pred_region
            loop: start=0, step=1, limit=1
            $region29: #{custom-call.12} parent=27 // loop_pre_header
              _
            $region30: #{custom-call.12} parent=27 // loop_header
              %s98 = sphi 0, %s102
              %p99 = scmp.ge.s32.totalorder %s98, 1
              %s103 = sphi %s89, %s89
              %s104 = sphi %s87, %s87
            $region31: #{custom-call.12} parent=27 // loop_header_branch
              %101 = sbr.rel (%p99) target = $region35
            $region32: #{custom-call.12} parent=27 // loop_body
              %v105 = vld [vmem:[%s103] sm:$0xf]
              %106 = vst [vmem:[%s104] sm:$0xf] %v105
            $region33: #{custom-call.12} parent=27 // loop_footer
              %s102 = sadd.s32 1, %s98
            $region34: #{custom-call.12} parent=27 // loop_footer_branch
              %97 = sbr.rel target = $region30
            $region35: #{custom-call.12} parent=27 // loop_exit
              _
          $region28: #{custom-call.12} parent=19 // pred_fallthru
            _
        $region20: #{custom-call.12} parent=15 // pred_fallthru
          _
        %120 = vnop
      $region16: #{custom-call.12} parent=5 // pred_fallthru
        _
      %p121 = scmp.le.s32.totalorder 1, %s9
      %p122 = scmp.lt.s32.totalorder %s9, 3
      %p123 = pnand %p121, %p122
      %p124 = pneg %p123
      // Predicated region
      $region47: #{custom-call.12} parent=5 // pred_check
        _
      $region48: #{custom-call.12} parent=5 // pred_check_branch
        %126 = sbr.rel (%p123) target = $region50
      $region49: #{custom-call.12} parent=5 // pred_region
        #allocation9 [shape = 's32[4,128]{1,0}', space=vmem, size = 0x1000, scoped, tag = 'scratch for permutations']
        %s127 = ssub.s32 %s9, 1
        %s128 = sand.u32 %s14, 1
        %s129 = sand.u32 %s14, 1
        %s130 = smul.addr %s129, 4
        %s131 = scalar_lea.vmem [#allocation1], %s130
        %s132 = sand.u32 %s14, 1
        %s133 = sand.u32 %s14, 1
        %s134 = smul.addr %s133, 4
        %s135 = scalar_lea.vmem [#allocation1], %s134
        %s136 = sand.u32 %s14, 1
        %s137 = sand.u32 %s14, 1
        %s138 = smul.addr %s137, 4
        %s139 = scalar_lea.vmem [#allocation3], %s138
        %p140 = pneg %p37
        %p141 = pneg %p34
        %s142 = sand.u32 %s24, 1
        %s143 = sand.u32 %s24, 1
        %s144 = smul.addr %s143, 2
        %s145 = scalar_lea.vmem [#allocation5], %s144
        %p146 = pneg %p65
        %p147 = pneg %p62
        %s148 = sand.u32 %s52, 1
        %s149 = scalar_lea.sflag [#allocation8], %s148
        %s150 = sand.u32 %s52, 1
        %s151 = smul.addr %s150, 2
        %s152 = scalar_lea.vmem [#allocation7], %s151
        %s154 = sshllo.u32 0, 4
        %v155 = vld [vmem:[%s135] sm:%s154]
        %156 = vst [vmem:[#allocation0] sm:%s154] %v155
        %s157 = sshrl.u32 %s14, 3
        %s158 = sshrl.u32 %s14, 3
        %v159 = vld [vmem:[#allocation0] sm:$0xff]
        %160 = vst [vmem:[#allocation2] sm:$0xff] %v159
        %s161 = sand.u32 %s14, 7
        %s162 = scalar_lea.vmem [#allocation4], %s161
        %s163 = sand.u32 %s14, 7
        %s164 = scalar_lea.vmem [#allocation6], %s163
        %165 = vst [vmem:[%s162] sm:$0x1] 0
        %v166 = vlaneseq
        %v167 = vshrl.u32 %v166, 7
        %v168 = vmov %v167
        %170 = vst [vmem:[#allocation9] sm:$0xff] %v168
        loop: start=0, step=1, limit=4
        $region52: #{custom-call.12} parent=49 // loop_pre_header
          _
        $region53: #{custom-call.12} parent=49 // loop_header
          %s172 = sphi 0, %s176
          %p173 = scmp.ge.s32.totalorder %s172, 4
        $region54: #{custom-call.12} parent=49 // loop_header_branch
          %175 = sbr.rel (%p173) target = $region58
        $region55: #{custom-call.12} parent=49 // loop_body
          %v177 = vstv %s172
          %v178 = vlaneseq
          %v179 = vshrl.u32 %v178, 7
          %v180 = vmov %v179
          %v181 = vld [vmem:[#allocation2] sm:$0xff]
          %v182 = vand.u32 2147483647, %v181
          %v184 = vstv %s172
          %vm185 = vcmp.ge.s32.totalorder %v180, %v184
          %vm186 = vcmp.lt.s32.totalorder %v180, 4
          %vm187 = vmand %vm185, %vm186
          %vm188 = vcmp.lt.f32.partialorder -inf, %v182
          %vm189 = vmand %vm187, %vm188
          %v190 = vsel %vm189, %v180, %v177
          %v191 = vsel %vm189, %v182, -inf
          %v192 = vrot.slane %v191, 1
          %v193 = vrot.slane %v190, 1
          %vm194 = vcmp.ge.f32.partialorder %v192, %v191
          %v195 = vsel %vm194, %v192, %v191
          %v196 = vsel %vm194, %v193, %v190
          %v197 = vrot.slane %v192, 1
          %v198 = vrot.slane %v193, 1
          %vm199 = vcmp.ge.f32.partialorder %v197, %v195
          %v200 = vsel %vm199, %v197, %v195
          %v201 = vsel %vm199, %v198, %v196
          %v202 = vrot.slane %v197, 1
          %v203 = vrot.slane %v198, 1
          %vm204 = vcmp.ge.f32.partialorder %v202, %v200
          %v205 = vsel %vm204, %v202, %v200
          %v206 = vsel %vm204, %v203, %v201
          %v207 = vrot.slane %v202, 1
          %v208 = vrot.slane %v203, 1
          %vm209 = vcmp.ge.f32.partialorder %v207, %v205
          %v210 = vsel %vm209, %v207, %v205
          %v211 = vsel %vm209, %v208, %v206
          %v212 = vrot.slane %v207, 1
          %v213 = vrot.slane %v208, 1
          %vm214 = vcmp.ge.f32.partialorder %v212, %v210
          %v215 = vsel %vm214, %v212, %v210
          %v216 = vsel %vm214, %v213, %v211
          %v217 = vrot.slane %v212, 1
          %v218 = vrot.slane %v213, 1
          %vm219 = vcmp.ge.f32.partialorder %v217, %v215
          %v220 = vsel %vm219, %v217, %v215
          %v221 = vsel %vm219, %v218, %v216
          %v222 = vrot.slane %v217, 1
          %v223 = vrot.slane %v218, 1
          %vm224 = vcmp.ge.f32.partialorder %v222, %v220
          %v225 = vsel %vm224, %v222, %v220
          %v226 = vsel %vm224, %v223, %v221
          %s227 = ssub.s32 128, %s172
          %228 = vrot.lane.b32.xlu0 %v226, %s227
          %v229 = vpop.permute.xlu0 %228
          %s230 = vtos %v229
          %v231 = vstv %s172
          %v232 = vlaneseq
          %v233 = vand.u32 %v232, 127
          %vm234 = vcmp.eq.s32.totalorder %v233, %v231
          %v235 = vstv %s230
          %v236 = vld [vmem:[%s162] ss:$0 sm:$0xff]
          %v237 = vsel %vm234, %v235, %v236
          %238 = vst [vmem:[%s162] sm:$0x1] %v237
          %s239 = scalar_lea.vmem [#allocation2], %s172
          %s240 = scalar_lea.vmem [#allocation2], %s230
          %v241 = vld [vmem:[%s239] ss:$0 sm:$0xff]
          %v242 = vld [vmem:[%s240] ss:$0 sm:$0xff]
          %243 = vst [vmem:[%s240] sm:$0x1] %v241
          %244 = vst [vmem:[%s239] sm:$0x1] %v242
          %s245 = scalar_lea.vmem [#allocation9], %s172
          %s246 = scalar_lea.vmem [#allocation9], %s230
          %v247 = vld [vmem:[%s245] ss:$0 sm:$0xff]
          %v248 = vld [vmem:[%s246] ss:$0 sm:$0xff]
          %249 = vst [vmem:[%s246] sm:$0x1] %v247
          %250 = vst [vmem:[%s245] sm:$0x1] %v248
          %vm251 = vcmp.ne.f32.partialorder %v242, 0.0
          %vm252 = vmand %vm234, %vm251
          %v253 = vsel %vm252, %v242, 1.0
          %v254 = vlaneseq
          %v255 = vand.u32 %v254, 127
          %v256 = vstv %s172
          %vm257 = vcmp.gt.s32.totalorder %v255, %v256
          %v258 = vsel %vm257, %v242, 0.0
          %v259 = vlaneseq
          %v260 = vshrl.u32 %v259, 7
          %v261 = vmov %v260
          %v262 = vld [vmem:[#allocation2] sm:$0xff]
          %v264 = vstv %s172
          %vm265 = vcmp.gt.s32.totalorder %v261, %v264
          %v266 = vsel %vm265, %v253, 1.0
          %v267 = vrcp.pop %v266
          %v268 = vmul.f32 %v262, %v267
          %vm269 = vmand %vm265, %vm234
          %v270 = vsel %vm269, %v268, 0.0
          %271 = vadd.xlane.f32.xlu0 %v270
          %v272 = vpop.xlane.xlu0 %271
          %v273 = vmul.f32 %v272, %v258
          %v274 = vsub.f32 %v268, %v273
          %275 = vst [vmem:[#allocation2] sm:$0xff] %v274
        $region56: #{custom-call.12} parent=49 // loop_footer
          %s176 = sadd.s32 1, %s172
        $region57: #{custom-call.12} parent=49 // loop_footer_branch
          %171 = sbr.rel target = $region53
        $region58: #{custom-call.12} parent=49 // loop_exit
          _
        %v276 = vld [vmem:[#allocation9] sm:$0xff]
        %s277 = scalar_lea.vmem [#allocation9], 8
        %s278 = scalar_lea.vmem [#allocation9], 16
        %s279 = scalar_lea.vmem [#allocation9], 24
        %s280 = scalar_lea.vmem [#allocation9], 32
        %s281 = scalar_lea.vmem [#allocation9], 40
        %s282 = scalar_lea.vmem [#allocation9], 48
        %s283 = scalar_lea.vmem [#allocation9], 56
        %s284 = scalar_lea.vmem [#allocation9], 64
        %s285 = scalar_lea.vmem [#allocation9], 72
        %s286 = scalar_lea.vmem [#allocation9], 80
        %s287 = scalar_lea.vmem [#allocation9], 88
        %s288 = scalar_lea.vmem [#allocation9], 96
        %s289 = scalar_lea.vmem [#allocation9], 104
        %s290 = scalar_lea.vmem [#allocation9], 112
        %s291 = scalar_lea.vmem [#allocation9], 120
        %292 = vxpose.xlu0.b32.start [1/16] %v276, 128
        %293 = vxpose.xlu0.b32.cont [2/16] 0, 128
        %294 = vxpose.xlu0.b32.cont [3/16] 0, 128
        %295 = vxpose.xlu0.b32.cont [4/16] 0, 128
        %296 = vxpose.xlu0.b32.cont [5/16] 0, 128
        %297 = vxpose.xlu0.b32.cont [6/16] 0, 128
        %298 = vxpose.xlu0.b32.cont [7/16] 0, 128
        %299 = vxpose.xlu0.b32.cont [8/16] 0, 128
        %300 = vxpose.xlu0.b32.cont [9/16] 0, 128
        %301 = vxpose.xlu0.b32.cont [10/16] 0, 128
        %302 = vxpose.xlu0.b32.cont [11/16] 0, 128
        %303 = vxpose.xlu0.b32.cont [12/16] 0, 128
        %304 = vxpose.xlu0.b32.cont [13/16] 0, 128
        %305 = vxpose.xlu0.b32.cont [14/16] 0, 128
        %306 = vxpose.xlu0.b32.cont [15/16] 0, 128
        %307 = vxpose.xlu0.b32.end [16/16] 0, 128
        %v308 = vpop.trf.xlu0
        %v309 = vpop.trf.xlu0
        %v310 = vpop.trf.xlu0
        %v311 = vpop.trf.xlu0
        %v312 = vpop.trf.xlu0
        %v313 = vpop.trf.xlu0
        %v314 = vpop.trf.xlu0
        %v315 = vpop.trf.xlu0
        %v316 = vpop.trf.xlu0
        %v317 = vpop.trf.xlu0
        %v318 = vpop.trf.xlu0
        %v319 = vpop.trf.xlu0
        %v320 = vpop.trf.xlu0
        %v321 = vpop.trf.xlu0
        %v322 = vpop.trf.xlu0
        %v323 = vpop.trf.xlu0
        %324 = vst [vmem:[%s164] sm:$0x1] %v308
        %s326 = sshllo.u32 0, 4
        %v328 = vld [vmem:[#allocation2] sm:%s326]
        %s329 = sshllo.u32 0, 4
        %330 = vst [vmem:[%s139] sm:%s329] %v328
        %s332 = sshllo.u32 0, 2
        %v334 = vld [vmem:[#allocation4] sm:%s332]
        %s335 = sshllo.u32 0, 2
        %336 = vst [vmem:[%s145] sm:%s335] %v334
        %s338 = sshllo.u32 0, 2
        %v340 = vld [vmem:[#allocation6] sm:%s338]
        %s341 = sshllo.u32 0, 2
        %342 = vst [vmem:[%s152] sm:%s341] %v340
        %s343 = sand.u32 %s14, 1
        %s344 = sand.u32 %s14, 1
        %s345 = smul.addr %s344, 4
        %s346 = scalar_lea.vmem [#allocation3], %s345
        %s347 = sand.u32 %s24, 1
        %s348 = sand.u32 %s24, 1
        %s349 = smul.addr %s348, 2
        %s350 = scalar_lea.vmem [#allocation5], %s349
        %s351 = sand.u32 %s52, 1
        %s352 = scalar_lea.sflag [#allocation8], %s351
        %s353 = sand.u32 %s52, 1
        %s354 = smul.addr %s353, 2
        %s355 = scalar_lea.vmem [#allocation7], %s354
        %s356 = smul.addr %s14, 4
        %s357 = scalar_lea.vmem %s1, %s356
        // Predicated region
        $region59: #{custom-call.12} parent=49 // pred_check
          _
        $region60: #{custom-call.12} parent=49 // pred_check_branch
          %359 = sbr.rel (0) target = $region62
        $region61: #{custom-call.12} parent=49 // pred_region
          // Predicated region
          $region63: #{custom-call.12} parent=61 // pred_check
            _
          $region64: #{custom-call.12} parent=61 // pred_check_branch
            %361 = sbr.rel target = $region66
          $region65: #{custom-call.12} parent=61 // pred_region
            // Predicated region
            $region78: #{custom-call.12} parent=65 // pred_check
              _
            $region79: #{custom-call.12} parent=65 // pred_check_branch
              %376 = sbr.rel (0) target = $region81
            $region80: #{custom-call.12} parent=65 // pred_region
              loop: start=0, step=1, limit=1
              $region82: #{custom-call.12} parent=80 // loop_pre_header
                _
              $region83: #{custom-call.12} parent=80 // loop_header
                %s379 = sphi 0, %s383
                %p380 = scmp.ge.s32.totalorder %s379, 1
                %s384 = sphi %s346, %s346
                %s385 = sphi %s357, %s357
              $region84: #{custom-call.12} parent=80 // loop_header_branch
                %382 = sbr.rel (%p380) target = $region88
              $region85: #{custom-call.12} parent=80 // loop_body
                %v386 = vld [vmem:[%s384] sm:$0xf]
                %387 = vst [vmem:[%s385] sm:$0xf] %v386
              $region86: #{custom-call.12} parent=80 // loop_footer
                %s383 = sadd.s32 1, %s379
              $region87: #{custom-call.12} parent=80 // loop_footer_branch
                %378 = sbr.rel target = $region83
              $region88: #{custom-call.12} parent=80 // loop_exit
                _
            $region81: #{custom-call.12} parent=65 // pred_fallthru
              _
          $region66: #{custom-call.12} parent=61 // pred_fallthru
            _
          // Predicated region
          $region67: #{custom-call.12} parent=61 // pred_check
            _
          $region68: #{custom-call.12} parent=61 // pred_check_branch
            %363 = sbr.rel (0) target = $region70
          $region69: #{custom-call.12} parent=61 // pred_region
            loop: start=0, step=1, limit=1
            $region71: #{custom-call.12} parent=69 // loop_pre_header
              _
            $region72: #{custom-call.12} parent=69 // loop_header
              %s366 = sphi 0, %s370
              %p367 = scmp.ge.s32.totalorder %s366, 1
              %s371 = sphi %s346, %s346
              %s372 = sphi %s357, %s357
            $region73: #{custom-call.12} parent=69 // loop_header_branch
              %369 = sbr.rel (%p367) target = $region77
            $region74: #{custom-call.12} parent=69 // loop_body
              %v373 = vld [vmem:[%s371] sm:$0xf]
              %374 = vst [vmem:[%s372] sm:$0xf] %v373
            $region75: #{custom-call.12} parent=69 // loop_footer
              %s370 = sadd.s32 1, %s366
            $region76: #{custom-call.12} parent=69 // loop_footer_branch
              %365 = sbr.rel target = $region72
            $region77: #{custom-call.12} parent=69 // loop_exit
              _
          $region70: #{custom-call.12} parent=61 // pred_fallthru
            _
        $region62: #{custom-call.12} parent=49 // pred_fallthru
          _
        %388 = vnop
        // Predicated region
        $region89: #{custom-call.12} parent=49 // pred_check
          %p389 = pneg %p34
        $region90: #{custom-call.12} parent=49 // pred_check_branch
          %391 = sbr.rel (%p389) target = $region92
        $region91: #{custom-call.12} parent=49 // pred_region
          %s392 = sshrl.u32 %s14, 3
          %s393 = smul.addr %s392, 2
          %s394 = scalar_lea.vmem %s2, %s393
          // Predicated region
          $region93: #{custom-call.12} parent=91 // pred_check
            _
          $region94: #{custom-call.12} parent=91 // pred_check_branch
            %396 = sbr.rel (0) target = $region96
          $region95: #{custom-call.12} parent=91 // pred_region
            // Predicated region
            $region97: #{custom-call.12} parent=95 // pred_check
              _
            $region98: #{custom-call.12} parent=95 // pred_check_branch
              %398 = sbr.rel target = $region100
            $region99: #{custom-call.12} parent=95 // pred_region
              // Predicated region
              $region112: #{custom-call.12} parent=99 // pred_check
                _
              $region113: #{custom-call.12} parent=99 // pred_check_branch
                %413 = sbr.rel (0) target = $region115
              $region114: #{custom-call.12} parent=99 // pred_region
                loop: start=0, step=1, limit=1
                $region116: #{custom-call.12} parent=114 // loop_pre_header
                  _
                $region117: #{custom-call.12} parent=114 // loop_header
                  %s416 = sphi 0, %s420
                  %p417 = scmp.ge.s32.totalorder %s416, 1
                  %s421 = sphi %s350, %s350
                  %s422 = sphi %s394, %s394
                $region118: #{custom-call.12} parent=114 // loop_header_branch
                  %419 = sbr.rel (%p417) target = $region122
                $region119: #{custom-call.12} parent=114 // loop_body
                  %v423 = vld [vmem:[%s421] sm:$0x3]
                  %424 = vst [vmem:[%s422] sm:$0x3] %v423
                $region120: #{custom-call.12} parent=114 // loop_footer
                  %s420 = sadd.s32 1, %s416
                $region121: #{custom-call.12} parent=114 // loop_footer_branch
                  %415 = sbr.rel target = $region117
                $region122: #{custom-call.12} parent=114 // loop_exit
                  _
              $region115: #{custom-call.12} parent=99 // pred_fallthru
                _
            $region100: #{custom-call.12} parent=95 // pred_fallthru
              _
            // Predicated region
            $region101: #{custom-call.12} parent=95 // pred_check
              _
            $region102: #{custom-call.12} parent=95 // pred_check_branch
              %400 = sbr.rel (0) target = $region104
            $region103: #{custom-call.12} parent=95 // pred_region
              loop: start=0, step=1, limit=1
              $region105: #{custom-call.12} parent=103 // loop_pre_header
                _
              $region106: #{custom-call.12} parent=103 // loop_header
                %s403 = sphi 0, %s407
                %p404 = scmp.ge.s32.totalorder %s403, 1
                %s408 = sphi %s350, %s350
                %s409 = sphi %s394, %s394
              $region107: #{custom-call.12} parent=103 // loop_header_branch
                %406 = sbr.rel (%p404) target = $region111
              $region108: #{custom-call.12} parent=103 // loop_body
                %v410 = vld [vmem:[%s408] sm:$0x3]
                %411 = vst [vmem:[%s409] sm:$0x3] %v410
              $region109: #{custom-call.12} parent=103 // loop_footer
                %s407 = sadd.s32 1, %s403
              $region110: #{custom-call.12} parent=103 // loop_footer_branch
                %402 = sbr.rel target = $region106
              $region111: #{custom-call.12} parent=103 // loop_exit
                _
            $region104: #{custom-call.12} parent=95 // pred_fallthru
              _
          $region96: #{custom-call.12} parent=91 // pred_fallthru
            _
          %425 = vnop
        $region92: #{custom-call.12} parent=49 // pred_fallthru
          _
        // Predicated region
        $region123: #{custom-call.12} parent=49 // pred_check
          %p426 = pneg %p62
        $region124: #{custom-call.12} parent=49 // pred_check_branch
          %428 = sbr.rel (%p426) target = $region126
        $region125: #{custom-call.12} parent=49 // pred_region
          %s429 = sshrl.u32 %s14, 3
          %s431 = ssub.s32 32, 32
          %432 = vsyncadd %s352, %s431
          %s433 = smul.addr %s429, 32
          %s434 = scalar_lea.hbm %s3, %s433
          %s436 = sshll.u32 %s355, 4
          %s437 = int_to_ptr.vmem [resolvable:$true] %s436
          %439 = dma.vmem_to_hbm [thread:$0]  %s437, 32, %s434, %s352
        $region126: #{custom-call.12} parent=49 // pred_fallthru
          _
      $region50: #{custom-call.12} parent=5 // pred_fallthru
        _
      %p440 = scmp.le.s32.totalorder 2, %s9
      // Predicated region
      $region127: #{custom-call.12} parent=5 // pred_check
        %p441 = pneg %p440
      $region128: #{custom-call.12} parent=5 // pred_check_branch
        %443 = sbr.rel (%p441) target = $region130
      $region129: #{custom-call.12} parent=5 // pred_region
        %s444 = ssub.s32 %s9, 2
        %s445 = sand.u32 %s15, 1
        %s446 = sand.u32 %s15, 1
        %s447 = smul.addr %s446, 4
        %s448 = scalar_lea.vmem [#allocation3], %s447
        // Predicated region
        $region131: #{custom-call.12} parent=129 // pred_check
          %p449 = pneg %p40
        $region132: #{custom-call.12} parent=129 // pred_check_branch
          %451 = sbr.rel (%p449) target = $region134
        $region133: #{custom-call.12} parent=129 // pred_region
          %s452 = sand.u32 %s25, 1
          %s453 = sand.u32 %s25, 1
          %s454 = smul.addr %s453, 2
          %s455 = scalar_lea.vmem [#allocation5], %s454
        $region134: #{custom-call.12} parent=129 // pred_fallthru
          _
        // Predicated region
        $region135: #{custom-call.12} parent=129 // pred_check
          %p456 = pneg %p68
        $region136: #{custom-call.12} parent=129 // pred_check_branch
          %458 = sbr.rel (%p456) target = $region138
        $region137: #{custom-call.12} parent=129 // pred_region
          %s459 = sand.u32 %s53, 1
          %s460 = scalar_lea.sflag [#allocation8], %s459
          %s461 = sand.u32 %s53, 1
          %s462 = smul.addr %s461, 2
          %s463 = scalar_lea.vmem [#allocation7], %s462
          %464 = dma.done %s460, 32
        $region138: #{custom-call.12} parent=129 // pred_fallthru
          _
      $region130: #{custom-call.12} parent=5 // pred_fallthru
        _
    $region6: #{custom-call.12} parent=1 // loop_footer
      %s13 = sadd.s32 1, %s9
    $region7: #{custom-call.12} parent=1 // loop_footer_branch
      %8 = sbr.rel target = $region3
    $region8: #{custom-call.12} parent=1 // loop_exit
      _
    %465 = vsyncpa [#allocation8], 1
    %s466 = scalar_lea.sflag [#allocation8], 1
    %467 = vsyncpa %s466, 1

// kernel: rotation_matrix_net.1
$region0: #{rotation_matrix_net.1}
  #allocation0 [shape = 'u32[]', space=smem, size = 0x4, offset = 0x4, fixed_abs, tag = 'smem constant byte address 0x4 - core index']
  #allocation1 [shape = 'u32[144,128]{1,0:T(1,128)}', space=vmem, size = 0x12000, scoped, tag = 'internal scratch']
  %s0 = inlined_call_operand.vmem [shape: f32[8,32], index: 0, kind: input, shape index: {}]
  %s1 = inlined_call_operand.vmem [shape: bf16[32,128], index: 1, kind: input, shape index: {}]
  %s2 = inlined_call_operand.vmem [shape: f32[1,128], index: 2, kind: input, shape index: {}]
  %s3 = inlined_call_operand.hbm [shape: bf16[128,128], index: 3, kind: input, shape index: {}]
  %s4 = inlined_call_operand.vmem [shape: f32[1,128], index: 4, kind: input, shape index: {}]
  %s5 = inlined_call_operand.hbm [shape: bf16[128,128], index: 5, kind: input, shape index: {}]
  %s6 = inlined_call_operand.vmem [shape: f32[1,128], index: 6, kind: input, shape index: {}]
  %s7 = inlined_call_operand.vmem [shape: f32[8,128], index: 7, kind: output, shape index: {}]
  %s8 = sld [smem:[#allocation0]]
  $region46: #{rotation_matrix_net.1} parent=0
    _
  %s10 = ssub.s32 1, %s8
  %s11 = scalar_select 0, %s10, %s8
  $region1: #{rotation_matrix_net.1} parent=0
    #allocation2 [shape = 'u8[32768]{0}', space=vmem, size = 0x8000, scoped, tag = 'input window, operand 3, single buffered']
    #allocation3 [shape = 's32[1]{0}', space=sflag, size = 0x4, scoped, tag = 'scoped memory for rotation_matrix_net.1']
    #allocation4 [shape = 'u8[32768]{0}', space=vmem, size = 0x8000, scoped, tag = 'input window, operand 5, single buffered']
    #allocation5 [shape = 's32[1]{0}', space=sflag, size = 0x4, scoped, tag = 'scoped memory for rotation_matrix_net.1']
    %12 = vsyncpa [#allocation3], 0
    %13 = vsyncpa [#allocation5], 0
    // Predicated region
    $region2: #{rotation_matrix_net.1} parent=1 // pred_check
      _
    $region3: #{rotation_matrix_net.1} parent=1 // pred_check_branch
      %15 = sbr.rel (0) target = $region5
    $region4: #{rotation_matrix_net.1} parent=1 // pred_region
      _
    $region5: #{rotation_matrix_net.1} parent=1 // pred_fallthru
      _
    // Predicated region
    $region6: #{rotation_matrix_net.1} parent=1 // pred_check
      _
    $region7: #{rotation_matrix_net.1} parent=1 // pred_check_branch
      %17 = sbr.rel (0) target = $region9
    $region8: #{rotation_matrix_net.1} parent=1 // pred_region
      _
    $region9: #{rotation_matrix_net.1} parent=1 // pred_fallthru
      _
    // Predicated region
    $region10: #{rotation_matrix_net.1} parent=1 // pred_check
      _
    $region11: #{rotation_matrix_net.1} parent=1 // pred_check_branch
      %19 = sbr.rel (0) target = $region13
    $region12: #{rotation_matrix_net.1} parent=1 // pred_region
      _
    $region13: #{rotation_matrix_net.1} parent=1 // pred_fallthru
      _
    // Predicated region
    $region14: #{rotation_matrix_net.1} parent=1 // pred_check
      _
    $region15: #{rotation_matrix_net.1} parent=1 // pred_check_branch
      %21 = sbr.rel (0) target = $region17
    $region16: #{rotation_matrix_net.1} parent=1 // pred_region
      %s23 = ssub.s32 1024, 1024
      %24 = vsyncadd [#allocation3], %s23
      %s25 = sshll.u32 [#allocation2], 4
      %s26 = int_to_ptr.vmem [resolvable:$true] %s25
      %31 = dma.hbm_to_vmem [thread:$0]  %s3, 1024, %s26, [#allocation3], 64, 64, 4
    $region17: #{rotation_matrix_net.1} parent=1 // pred_fallthru
      _
    // Predicated region
    $region18: #{rotation_matrix_net.1} parent=1 // pred_check
      _
    $region19: #{rotation_matrix_net.1} parent=1 // pred_check_branch
      %33 = sbr.rel (0) target = $region21
    $region20: #{rotation_matrix_net.1} parent=1 // pred_region
      _
    $region21: #{rotation_matrix_net.1} parent=1 // pred_fallthru
      _
    // Predicated region
    $region22: #{rotation_matrix_net.1} parent=1 // pred_check
      _
    $region23: #{rotation_matrix_net.1} parent=1 // pred_check_branch
      %35 = sbr.rel (0) target = $region25
    $region24: #{rotation_matrix_net.1} parent=1 // pred_region
      %s37 = ssub.s32 1024, 1024
      %38 = vsyncadd [#allocation5], %s37
      %s39 = sshll.u32 [#allocation4], 4
      %s40 = int_to_ptr.vmem [resolvable:$true] %s39
      %45 = dma.hbm_to_vmem [thread:$0]  %s5, 1024, %s40, [#allocation5], 64, 64, 4
    $region25: #{rotation_matrix_net.1} parent=1 // pred_fallthru
      _
    // Predicated region
    $region26: #{rotation_matrix_net.1} parent=1 // pred_check
      _
    $region27: #{rotation_matrix_net.1} parent=1 // pred_check_branch
      %47 = sbr.rel (0) target = $region29
    $region28: #{rotation_matrix_net.1} parent=1 // pred_region
      _
    $region29: #{rotation_matrix_net.1} parent=1 // pred_fallthru
      _
    // Predicated region
    $region30: #{rotation_matrix_net.1} parent=1 // pred_check
      _
    $region31: #{rotation_matrix_net.1} parent=1 // pred_check_branch
      %49 = sbr.rel (0) target = $region33
    $region32: #{rotation_matrix_net.1} parent=1 // pred_region
      %50 = dma.done [#allocation3], 1024
    $region33: #{rotation_matrix_net.1} parent=1 // pred_fallthru
      _
    // Predicated region
    $region34: #{rotation_matrix_net.1} parent=1 // pred_check
      _
    $region35: #{rotation_matrix_net.1} parent=1 // pred_check_branch
      %52 = sbr.rel (0) target = $region37
    $region36: #{rotation_matrix_net.1} parent=1 // pred_region
      %53 = dma.done [#allocation5], 1024
    $region37: #{rotation_matrix_net.1} parent=1 // pred_fallthru
      _
    %v55 = vld [vmem:[%s0] sm:$0xff]
    %v56 = vpack.c.bf16 %v55, %v55
    %v57 = vld [vmem:[%s1] sm:$0xf]
    %v58 = vld [vmem:[%s1 + $0x4] sm:$0xf]
    %v59 = vld [vmem:[%s1 + $0x8] sm:$0xf]
    %v60 = vld [vmem:[%s1 + $0xc] sm:$0xf]
    %v61 = vld [vmem:[%s2] sm:$0x1]
    %v63 = vlaneseq
    %v64 = vshrl.u32 %v63, 7
    %v65 = vsub.s32 0, %v64
    %v66 = vrot.slane %v61, %v65
    %v72 = vunpack.c.l.b16 %v57
    %v73 = vunpack.c.l.b16 %v58
    %v74 = vunpack.c.l.b16 %v59
    %v75 = vunpack.c.l.b16 %v60
    %v76 = vpack.c.b16 %v73, %v72
    %v77 = vpack.c.b16 %v75, %v74
    %vm80 = vcmask 261120
    %v82 = vsel %vm80, %v56, 0
    %84 = vmatprep.subr.bf16.mxu0 0
    %85 = vmatpush1.bf16.msra.mxu0 %v76
    %86 = vmatprep.subr.bf16.mxu0 0
    %87 = vmatpush1.bf16.msra.mxu0 %v77
    %88 = vmatprep.subr.bf16.mxu0 0
    %89 = vmatpush1.bf16.msra.mxu0 0
    %90 = vmatprep.subr.bf16.mxu0 0
    %91 = vmatpush1.bf16.msra.mxu0 0
    %92 = vmatprep.subr.bf16.mxu0 0
    %93 = vmatpush1.bf16.msra.mxu0 0
    %94 = vmatprep.subr.bf16.mxu0 0
    %95 = vmatpush1.bf16.msra.mxu0 0
    %96 = vmatprep.subr.bf16.mxu0 0
    %97 = vmatpush1.bf16.msra.mxu0 0
    %98 = vmatprep.subr.bf16.mxu0 0
    %99 = vmatpush1.bf16.msra.mxu0 0
    %100 = vmatprep.subr.bf16.mxu0 0
    %101 = vmatpush1.bf16.msra.mxu0 0
    %102 = vmatprep.subr.bf16.mxu0 0
    %103 = vmatpush1.bf16.msra.mxu0 0
    %104 = vmatprep.subr.bf16.mxu0 0
    %105 = vmatpush1.bf16.msra.mxu0 0
    %106 = vmatprep.subr.bf16.mxu0 0
    %107 = vmatpush1.bf16.msra.mxu0 0
    %108 = vmatprep.subr.bf16.mxu0 0
    %109 = vmatpush1.bf16.msra.mxu0 0
    %110 = vmatprep.subr.bf16.mxu0 0
    %111 = vmatpush1.bf16.msra.mxu0 0
    %112 = vmatprep.subr.bf16.mxu0 0
    %113 = vmatpush1.bf16.msra.mxu0 0
    %114 = vmatprep.subr.bf16.mxu0 0
    %115 = vmatpush1.bf16.msra.mxu0 0
    %116 = vmatprep.mubr.bf16.mxu0 0
    %117 = vmatmul.mubr.bf16.gmra.mrb[0].mxu0 %v82
    %v118 = vpop.f32.mrb[0].mxu0
    %v119 = vadd.f32 %v66, %v118
    %v120 = vpop.f32.mrb[0].mxu0
    %v121 = vpop.f32.mrb[0].mxu0
    %v122 = vpop.f32.mrb[0].mxu0
    %123 = vdwg.mxu0
    %v124 = vmax.f32 %v119, 0.0
    %v125 = vpack.c.bf16 %v124, %v124
    %v126 = vld [vmem:[#allocation2] sm:$0xf]
    %v127 = vld [vmem:[#allocation2 + $0x4] sm:$0xf]
    %v128 = vld [vmem:[#allocation2 + $0x8] sm:$0xf]
    %v129 = vld [vmem:[#allocation2 + $0xc] sm:$0xf]
    %v130 = vld [vmem:[#allocation2 + $0x10] sm:$0xf]
    %v131 = vld [vmem:[#allocation2 + $0x14] sm:$0xf]
    %v132 = vld [vmem:[#allocation2 + $0x18] sm:$0xf]
    %v133 = vld [vmem:[#allocation2 + $0x1c] sm:$0xf]
    %v134 = vld [vmem:[#allocation2 + $0x20] sm:$0xf]
    %v135 = vld [vmem:[#allocation2 + $0x24] sm:$0xf]
    %v136 = vld [vmem:[#allocation2 + $0x28] sm:$0xf]
    %v137 = vld [vmem:[#allocation2 + $0x2c] sm:$0xf]
    %v138 = vld [vmem:[#allocation2 + $0x30] sm:$0xf]
    %v139 = vld [vmem:[#allocation2 + $0x34] sm:$0xf]
    %v140 = vld [vmem:[#allocation2 + $0x38] sm:$0xf]
    %v141 = vld [vmem:[#allocation2 + $0x3c] sm:$0xf]
    %v142 = vld [vmem:[%s4] sm:$0x1]
    %v144 = vlaneseq
    %v145 = vshrl.u32 %v144, 7
    %v146 = vsub.s32 0, %v145
    %v147 = vrot.slane %v142, %v146
    %v165 = vunpack.c.l.b16 %v126
    %v166 = vunpack.c.l.b16 %v127
    %v167 = vunpack.c.l.b16 %v128
    %v168 = vunpack.c.l.b16 %v129
    %v169 = vunpack.c.l.b16 %v130
    %v170 = vunpack.c.l.b16 %v131
    %v171 = vunpack.c.l.b16 %v132
    %v172 = vunpack.c.l.b16 %v133
    %v173 = vunpack.c.l.b16 %v134
    %v174 = vunpack.c.l.b16 %v135
    %v175 = vunpack.c.l.b16 %v136
    %v176 = vunpack.c.l.b16 %v137
    %v177 = vunpack.c.l.b16 %v138
    %v178 = vunpack.c.l.b16 %v139
    %v179 = vunpack.c.l.b16 %v140
    %v180 = vunpack.c.l.b16 %v141
    %v181 = vpack.c.b16 %v166, %v165
    %v182 = vpack.c.b16 %v168, %v167
    %v183 = vpack.c.b16 %v170, %v169
    %v184 = vpack.c.b16 %v172, %v171
    %v185 = vpack.c.b16 %v174, %v173
    %v186 = vpack.c.b16 %v176, %v175
    %v187 = vpack.c.b16 %v178, %v177
    %v188 = vpack.c.b16 %v180, %v179
    %197 = vmatprep.subr.bf16.mxu0 0
    %198 = vmatpush1.bf16.msra.mxu0 %v181
    %199 = vmatprep.subr.bf16.mxu0 0
    %200 = vmatpush1.bf16.msra.mxu0 %v182
    %201 = vmatprep.subr.bf16.mxu0 0
    %202 = vmatpush1.bf16.msra.mxu0 %v183
    %203 = vmatprep.subr.bf16.mxu0 0
    %204 = vmatpush1.bf16.msra.mxu0 %v184
    %205 = vmatprep.subr.bf16.mxu0 0
    %206 = vmatpush1.bf16.msra.mxu0 %v185
    %207 = vmatprep.subr.bf16.mxu0 0
    %208 = vmatpush1.bf16.msra.mxu0 %v186
    %209 = vmatprep.subr.bf16.mxu0 0
    %210 = vmatpush1.bf16.msra.mxu0 %v187
    %211 = vmatprep.subr.bf16.mxu0 0
    %212 = vmatpush1.bf16.msra.mxu0 %v188
    %213 = vmatprep.subr.bf16.mxu0 0
    %214 = vmatpush1.bf16.msra.mxu0 0
    %215 = vmatprep.subr.bf16.mxu0 0
    %216 = vmatpush1.bf16.msra.mxu0 0
    %217 = vmatprep.subr.bf16.mxu0 0
    %218 = vmatpush1.bf16.msra.mxu0 0
    %219 = vmatprep.subr.bf16.mxu0 0
    %220 = vmatpush1.bf16.msra.mxu0 0
    %221 = vmatprep.subr.bf16.mxu0 0
    %222 = vmatpush1.bf16.msra.mxu0 0
    %223 = vmatprep.subr.bf16.mxu0 0
    %224 = vmatpush1.bf16.msra.mxu0 0
    %225 = vmatprep.subr.bf16.mxu0 0
    %226 = vmatpush1.bf16.msra.mxu0 0
    %227 = vmatprep.subr.bf16.mxu0 0
    %228 = vmatpush1.bf16.msra.mxu0 0
    %229 = vmatprep.mubr.bf16.mxu0 0
    %230 = vmatmul.mubr.bf16.gmra.mrb[0].mxu0 %v125
    %v231 = vpop.f32.mrb[0].mxu0
    %v232 = vadd.f32 %v147, %v231
    %v233 = vpop.f32.mrb[0].mxu0
    %v234 = vpop.f32.mrb[0].mxu0
    %v235 = vpop.f32.mrb[0].mxu0
    %236 = vdwg.mxu0
    %v237 = vmax.f32 %v232, 0.0
    %v238 = vpack.c.bf16 %v237, %v237
    %v239 = vld [vmem:[#allocation4] sm:$0xf]
    %v240 = vld [vmem:[#allocation4 + $0x4] sm:$0xf]
    %v241 = vld [vmem:[#allocation4 + $0x8] sm:$0xf]
    %v242 = vld [vmem:[#allocation4 + $0xc] sm:$0xf]
    %v243 = vld [vmem:[#allocation4 + $0x10] sm:$0xf]
    %v244 = vld [vmem:[#allocation4 + $0x14] sm:$0xf]
    %v245 = vld [vmem:[#allocation4 + $0x18] sm:$0xf]
    %v246 = vld [vmem:[#allocation4 + $0x1c] sm:$0xf]
    %v247 = vld [vmem:[#allocation4 + $0x20] sm:$0xf]
    %v248 = vld [vmem:[#allocation4 + $0x24] sm:$0xf]
    %v249 = vld [vmem:[#allocation4 + $0x28] sm:$0xf]
    %v250 = vld [vmem:[#allocation4 + $0x2c] sm:$0xf]
    %v251 = vld [vmem:[#allocation4 + $0x30] sm:$0xf]
    %v252 = vld [vmem:[#allocation4 + $0x34] sm:$0xf]
    %v253 = vld [vmem:[#allocation4 + $0x38] sm:$0xf]
    %v254 = vld [vmem:[#allocation4 + $0x3c] sm:$0xf]
    %v255 = vld [vmem:[%s6] sm:$0x1]
    %v257 = vlaneseq
    %v258 = vshrl.u32 %v257, 7
    %v259 = vsub.s32 0, %v258
    %v260 = vrot.slane %v255, %v259
    %v278 = vunpack.c.l.b16 %v239
    %v279 = vunpack.c.l.b16 %v240
    %v280 = vunpack.c.l.b16 %v241
    %v281 = vunpack.c.l.b16 %v242
    %v282 = vunpack.c.l.b16 %v243
    %v283 = vunpack.c.l.b16 %v244
    %v284 = vunpack.c.l.b16 %v245
    %v285 = vunpack.c.l.b16 %v246
    %v286 = vunpack.c.l.b16 %v247
    %v287 = vunpack.c.l.b16 %v248
    %v288 = vunpack.c.l.b16 %v249
    %v289 = vunpack.c.l.b16 %v250
    %v290 = vunpack.c.l.b16 %v251
    %v291 = vunpack.c.l.b16 %v252
    %v292 = vunpack.c.l.b16 %v253
    %v293 = vunpack.c.l.b16 %v254
    %v294 = vpack.c.b16 %v279, %v278
    %v295 = vpack.c.b16 %v281, %v280
    %v296 = vpack.c.b16 %v283, %v282
    %v297 = vpack.c.b16 %v285, %v284
    %v298 = vpack.c.b16 %v287, %v286
    %v299 = vpack.c.b16 %v289, %v288
    %v300 = vpack.c.b16 %v291, %v290
    %v301 = vpack.c.b16 %v293, %v292
    %310 = vmatprep.subr.bf16.mxu0 0
    %311 = vmatpush1.bf16.msra.mxu0 %v294
    %312 = vmatprep.subr.bf16.mxu0 0
    %313 = vmatpush1.bf16.msra.mxu0 %v295
    %314 = vmatprep.subr.bf16.mxu0 0
    %315 = vmatpush1.bf16.msra.mxu0 %v296
    %316 = vmatprep.subr.bf16.mxu0 0
    %317 = vmatpush1.bf16.msra.mxu0 %v297
    %318 = vmatprep.subr.bf16.mxu0 0
    %319 = vmatpush1.bf16.msra.mxu0 %v298
    %320 = vmatprep.subr.bf16.mxu0 0
    %321 = vmatpush1.bf16.msra.mxu0 %v299
    %322 = vmatprep.subr.bf16.mxu0 0
    %323 = vmatpush1.bf16.msra.mxu0 %v300
    %324 = vmatprep.subr.bf16.mxu0 0
    %325 = vmatpush1.bf16.msra.mxu0 %v301
    %326 = vmatprep.subr.bf16.mxu0 0
    %327 = vmatpush1.bf16.msra.mxu0 0
    %328 = vmatprep.subr.bf16.mxu0 0
    %329 = vmatpush1.bf16.msra.mxu0 0
    %330 = vmatprep.subr.bf16.mxu0 0
    %331 = vmatpush1.bf16.msra.mxu0 0
    %332 = vmatprep.subr.bf16.mxu0 0
    %333 = vmatpush1.bf16.msra.mxu0 0
    %334 = vmatprep.subr.bf16.mxu0 0
    %335 = vmatpush1.bf16.msra.mxu0 0
    %336 = vmatprep.subr.bf16.mxu0 0
    %337 = vmatpush1.bf16.msra.mxu0 0
    %338 = vmatprep.subr.bf16.mxu0 0
    %339 = vmatpush1.bf16.msra.mxu0 0
    %340 = vmatprep.subr.bf16.mxu0 0
    %341 = vmatpush1.bf16.msra.mxu0 0
    %342 = vmatprep.mubr.bf16.mxu0 0
    %343 = vmatmul.mubr.bf16.gmra.mrb[0].mxu0 %v238
    %v344 = vpop.f32.mrb[0].mxu0
    %v345 = vadd.f32 %v260, %v344
    %v346 = vpop.f32.mrb[0].mxu0
    %v347 = vpop.f32.mrb[0].mxu0
    %v348 = vpop.f32.mrb[0].mxu0
    %349 = vdwg.mxu0
    %350 = vst [vmem:[%s7] sm:$0xff] %v345
    // Predicated region
    $region38: #{rotation_matrix_net.1} parent=1 // pred_check
      _
    $region39: #{rotation_matrix_net.1} parent=1 // pred_check_branch
      %352 = sbr.rel (0) target = $region41
    $region40: #{rotation_matrix_net.1} parent=1 // pred_region
      _
    $region41: #{rotation_matrix_net.1} parent=1 // pred_fallthru
      _
    // Predicated region
    $region42: #{rotation_matrix_net.1} parent=1 // pred_check
      _
    $region43: #{rotation_matrix_net.1} parent=1 // pred_check_branch
      %354 = sbr.rel (0) target = $region45
    $region44: #{rotation_matrix_net.1} parent=1 // pred_region
      _
    $region45: #{rotation_matrix_net.1} parent=1 // pred_fallthru
      _
    %355 = vsyncpa [#allocation3], 1
    %356 = vsyncpa [#allocation5], 1

</llo_original>
